<compile_context>
chip_gen: v6e
topology: v6e:2x2x1
jax: 0.10.0
libtpu: 0.0.40
codegen_flags: <defaults>
</compile_context>

<pallas_src>
import jax
import jax.numpy as jnp
from jax.experimental import pallas as pl
from jax.experimental.pallas import tpu as pltpu


# ---------------------------------------------------------------------------
# Single-pair kernel: no grid, full arrays resident in VMEM.
# ---------------------------------------------------------------------------
def _pair_kernel(x1_ref, x2_ref, out_ref):
    v1 = jnp.dot(x1_ref[...], x2_ref[...], preferred_element_type=jnp.float32)
    n = v1.shape[0]
    # m = [v1; v1]  =>  m @ m = [w; w],  w = (v1[:, :N] + v1[:, N:]) @ v1
    folded = v1[:, :n] + v1[:, n:]
    w = jnp.dot(folded, v1, preferred_element_type=jnp.float32).astype(out_ref.dtype)
    out_ref[0:n, :] = w
    out_ref[n:2 * n, :] = w


def model_forward(x1, x2):
    n, k = x1.shape
    k2, two_n = x2.shape
    assert k == k2 and two_n == 2 * n, "need x1:(N,K), x2:(K,2N)"
    out_dtype = jnp.result_type(x1.dtype, x2.dtype)
    return pl.pallas_call(
        _pair_kernel,
        out_shape=jax.ShapeDtypeStruct((2 * n, 2 * n), out_dtype),
        in_specs=[
            pl.BlockSpec(memory_space=pltpu.MemorySpace.VMEM),
            pl.BlockSpec(memory_space=pltpu.MemorySpace.VMEM),
        ],
        out_specs=pl.BlockSpec(memory_space=pltpu.MemorySpace.VMEM),
    )(x1, x2)


# ---------------------------------------------------------------------------
# Batched kernel: one grid step handles `bc` pairs and writes one lane-dense
# (2N, bc*2N) column block of the (2N, B*2N) output slab.
# ---------------------------------------------------------------------------
def _batched_kernel(x1_ref, x2_ref, out_ref):
    bc, n, _ = x1_ref.shape          # (bc, N, K) block
    ws = []
    for b in range(bc):              # static unroll; bc is small (<=8 here)
        v1 = jnp.dot(x1_ref[b], x2_ref[b], preferred_element_type=jnp.float32)
        folded = v1[:, :n] + v1[:, n:]
        ws.append(jnp.dot(folded, v1, preferred_element_type=jnp.float32))
    w_slab = ws[0] if bc == 1 else jnp.concatenate(ws, axis=-1)   # (N, bc*2N)
    w_slab = w_slab.astype(out_ref.dtype)
    # "concat([v1, v1], 0)" effect: two full-width (lane-dense) row-block stores.
    out_ref[0:n, :] = w_slab
    out_ref[n:2 * n, :] = w_slab


def model_forward_batched(x1, x2):
    """x1: (B, N, K), x2: (B, K, 2N) -> (B, 2N, 2N)."""
    b, n, k = x1.shape
    b2, k2, two_n = x2.shape
    assert b == b2 and k == k2 and two_n == 2 * n, "need x1:(B,N,K), x2:(B,K,2N)"
    out_dtype = jnp.result_type(x1.dtype, x2.dtype)

    # Pack enough pairs per grid step that the output block is >=128 lanes wide.
    if two_n % 128 == 0:
        bc = 1
    else:
        assert 128 % two_n == 0, "TODO(synk): pad 2N up to 128 lanes for odd sizes"
        bc = 128 // two_n

    pad = (-b) % bc
    if pad:
        x1 = jnp.concatenate([x1, jnp.zeros((pad, n, k), x1.dtype)], axis=0)
        x2 = jnp.concatenate([x2, jnp.zeros((pad, k, two_n), x2.dtype)], axis=0)
    bp = b + pad

    # Footprint is tiny (KBs), so no vmem_limit tuning needed on any generation
    # (re-derive block sizes against v7x's 64 MiB VMEM if this is ever scaled up).
    slab = pl.pallas_call(
        _batched_kernel,
        out_shape=jax.ShapeDtypeStruct((2 * n, bp * two_n), out_dtype),
        grid=(bp // bc,),
        in_specs=[
            pl.BlockSpec((bc, n, k), lambda c: (c, 0, 0)),
            pl.BlockSpec((bc, k, two_n), lambda c: (c, 0, 0)),
        ],
        out_specs=pl.BlockSpec((2 * n, bc * two_n), lambda c: (0, c)),
        compiler_params=pltpu.CompilerParams(
            dimension_semantics=("parallel",)),   # 2x on v7x (2 TCs), free elsewhere
    )(x1, x2)

    # Wrapper-side layout plumbing only: (2N, B*2N) lane-dense slab -> (B, 2N, 2N).
    out = slab.reshape(2 * n, bp, two_n).transpose(1, 0, 2)
    return out[:b]


# ---------------------------------------------------------------------------
# Pure-JAX reference (mirrors the PyTorch module).
# ---------------------------------------------------------------------------
def _reference(x1, x2):
    v1 = jnp.dot(x1, x2, precision=jax.lax.Precision.HIGHEST)
    m = jnp.concatenate([v1, v1], axis=0)
    return jnp.dot(m, m, precision=jax.lax.Precision.HIGHEST)


if __name__ == "__main__":
    N, K, B = 8, 16, 16
    key = jax.random.PRNGKey(0)
    k1, k2 = jax.random.split(key)
    x1b = jax.random.normal(k1, (B, N, K), dtype=jnp.float32)
    x2b = jax.random.normal(k2, (B, K, 2 * N), dtype=jnp.float32)

    # Batched path (the performance-relevant one).
    out_b = model_forward_batched(x1b, x2b)
    jax.block_until_ready(out_b)
    ref_b = jax.vmap(_reference)(x1b, x2b)
    assert out_b.shape == (B, 2 * N, 2 * N)
    assert jnp.allclose(out_b, ref_b, atol=1e-2, rtol=1e-2), "batched mismatch"

    # Single-pair path (original module signature).
    out1 = model_forward(x1b[0], x2b[0])
    jax.block_until_ready(out1)
    ref1 = _reference(x1b[0], x2b[0])
    assert out1.shape == (2 * N, 2 * N)
    assert jnp.allclose(out1, ref1, atol=1e-2, rtol=1e-2), "single-pair mismatch"

    print("KERNEL_OK")
</pallas_src>

<mosaic_0001>
module attributes {stable_mosaic.version = 11 : i64} {
  func.func @_batched_kernel(%arg0: i32, %arg1: memref<8x8x16xf32, #tpu.memory_space<vmem>>, %arg2: memref<8x16x16xf32, #tpu.memory_space<vmem>>, %arg3: memref<16x128xf32, #tpu.memory_space<vmem>>) attributes {dimension_semantics = [#tpu.dimension_semantics<parallel>], iteration_bounds = array<i64: 2>, scalar_prefetch = 0 : i64, scratch_operands = 0 : i64, tpu.core_type = #tpu.core_type<tc>, window_params = [{transform_indices = @transform_0, window_bounds = array<i64: 8, 8, 16>}, {transform_indices = @transform_1, window_bounds = array<i64: 8, 16, 16>}, {transform_indices = @transform_2, window_bounds = array<i64: 16, 128>}]} {
    %c0 = arith.constant 0 : index
    %c0_0 = arith.constant 0 : index
    %c0_1 = arith.constant 0 : index
    %0 = vector.load %arg1[%c0, %c0_0, %c0_1] : memref<8x8x16xf32, #tpu.memory_space<vmem>>, vector<1x8x16xf32>
    %1 = vector.shape_cast %0 : vector<1x8x16xf32> to vector<8x16xf32>
    %c0_2 = arith.constant 0 : index
    %c0_3 = arith.constant 0 : index
    %c0_4 = arith.constant 0 : index
    %2 = vector.load %arg2[%c0_2, %c0_3, %c0_4] : memref<8x16x16xf32, #tpu.memory_space<vmem>>, vector<1x16x16xf32>
    %3 = vector.shape_cast %2 : vector<1x16x16xf32> to vector<16x16xf32>
    %cst = arith.constant dense<0.000000e+00> : vector<8x16xf32>
    %4 = tpu.matmul %1, %3, %cst {dimension_numbers = #tpu.dot_dimension_numbers<[1], [0], [0], [1], [0, 0, 1, 1], [], []>} : vector<8x16xf32>, vector<16x16xf32>, vector<8x16xf32> -> vector<8x16xf32>
    %5 = vector.extract_strided_slice %4 {offsets = [0, 0], sizes = [8, 8], strides = [1, 1]} : vector<8x16xf32> to vector<8x8xf32>
    %6 = vector.extract_strided_slice %4 {offsets = [0, 8], sizes = [8, 8], strides = [1, 1]} : vector<8x16xf32> to vector<8x8xf32>
    %7 = arith.addf %5, %6 : vector<8x8xf32>
    %cst_5 = arith.constant dense<0.000000e+00> : vector<8x16xf32>
    %8 = tpu.matmul %7, %4, %cst_5 {dimension_numbers = #tpu.dot_dimension_numbers<[1], [0], [0], [1], [0, 0, 1, 1], [], []>} : vector<8x8xf32>, vector<8x16xf32>, vector<8x16xf32> -> vector<8x16xf32>
    %c1 = arith.constant 1 : index
    %c0_6 = arith.constant 0 : index
    %c0_7 = arith.constant 0 : index
    %9 = vector.load %arg1[%c1, %c0_6, %c0_7] : memref<8x8x16xf32, #tpu.memory_space<vmem>>, vector<1x8x16xf32>
    %10 = vector.shape_cast %9 : vector<1x8x16xf32> to vector<8x16xf32>
    %c1_8 = arith.constant 1 : index
    %c0_9 = arith.constant 0 : index
    %c0_10 = arith.constant 0 : index
    %11 = vector.load %arg2[%c1_8, %c0_9, %c0_10] : memref<8x16x16xf32, #tpu.memory_space<vmem>>, vector<1x16x16xf32>
    %12 = vector.shape_cast %11 : vector<1x16x16xf32> to vector<16x16xf32>
    %cst_11 = arith.constant dense<0.000000e+00> : vector<8x16xf32>
    %13 = tpu.matmul %10, %12, %cst_11 {dimension_numbers = #tpu.dot_dimension_numbers<[1], [0], [0], [1], [0, 0, 1, 1], [], []>} : vector<8x16xf32>, vector<16x16xf32>, vector<8x16xf32> -> vector<8x16xf32>
    %14 = vector.extract_strided_slice %13 {offsets = [0, 0], sizes = [8, 8], strides = [1, 1]} : vector<8x16xf32> to vector<8x8xf32>
    %15 = vector.extract_strided_slice %13 {offsets = [0, 8], sizes = [8, 8], strides = [1, 1]} : vector<8x16xf32> to vector<8x8xf32>
    %16 = arith.addf %14, %15 : vector<8x8xf32>
    %cst_12 = arith.constant dense<0.000000e+00> : vector<8x16xf32>
    %17 = tpu.matmul %16, %13, %cst_12 {dimension_numbers = #tpu.dot_dimension_numbers<[1], [0], [0], [1], [0, 0, 1, 1], [], []>} : vector<8x8xf32>, vector<8x16xf32>, vector<8x16xf32> -> vector<8x16xf32>
    %c2 = arith.constant 2 : index
    %c0_13 = arith.constant 0 : index
    %c0_14 = arith.constant 0 : index
    %18 = vector.load %arg1[%c2, %c0_13, %c0_14] : memref<8x8x16xf32, #tpu.memory_space<vmem>>, vector<1x8x16xf32>
    %19 = vector.shape_cast %18 : vector<1x8x16xf32> to vector<8x16xf32>
    %c2_15 = arith.constant 2 : index
    %c0_16 = arith.constant 0 : index
    %c0_17 = arith.constant 0 : index
    %20 = vector.load %arg2[%c2_15, %c0_16, %c0_17] : memref<8x16x16xf32, #tpu.memory_space<vmem>>, vector<1x16x16xf32>
    %21 = vector.shape_cast %20 : vector<1x16x16xf32> to vector<16x16xf32>
    %cst_18 = arith.constant dense<0.000000e+00> : vector<8x16xf32>
    %22 = tpu.matmul %19, %21, %cst_18 {dimension_numbers = #tpu.dot_dimension_numbers<[1], [0], [0], [1], [0, 0, 1, 1], [], []>} : vector<8x16xf32>, vector<16x16xf32>, vector<8x16xf32> -> vector<8x16xf32>
    %23 = vector.extract_strided_slice %22 {offsets = [0, 0], sizes = [8, 8], strides = [1, 1]} : vector<8x16xf32> to vector<8x8xf32>
    %24 = vector.extract_strided_slice %22 {offsets = [0, 8], sizes = [8, 8], strides = [1, 1]} : vector<8x16xf32> to vector<8x8xf32>
    %25 = arith.addf %23, %24 : vector<8x8xf32>
    %cst_19 = arith.constant dense<0.000000e+00> : vector<8x16xf32>
    %26 = tpu.matmul %25, %22, %cst_19 {dimension_numbers = #tpu.dot_dimension_numbers<[1], [0], [0], [1], [0, 0, 1, 1], [], []>} : vector<8x8xf32>, vector<8x16xf32>, vector<8x16xf32> -> vector<8x16xf32>
    %c3 = arith.constant 3 : index
    %c0_20 = arith.constant 0 : index
    %c0_21 = arith.constant 0 : index
    %27 = vector.load %arg1[%c3, %c0_20, %c0_21] : memref<8x8x16xf32, #tpu.memory_space<vmem>>, vector<1x8x16xf32>
    %28 = vector.shape_cast %27 : vector<1x8x16xf32> to vector<8x16xf32>
    %c3_22 = arith.constant 3 : index
    %c0_23 = arith.constant 0 : index
    %c0_24 = arith.constant 0 : index
    %29 = vector.load %arg2[%c3_22, %c0_23, %c0_24] : memref<8x16x16xf32, #tpu.memory_space<vmem>>, vector<1x16x16xf32>
    %30 = vector.shape_cast %29 : vector<1x16x16xf32> to vector<16x16xf32>
    %cst_25 = arith.constant dense<0.000000e+00> : vector<8x16xf32>
    %31 = tpu.matmul %28, %30, %cst_25 {dimension_numbers = #tpu.dot_dimension_numbers<[1], [0], [0], [1], [0, 0, 1, 1], [], []>} : vector<8x16xf32>, vector<16x16xf32>, vector<8x16xf32> -> vector<8x16xf32>
    %32 = vector.extract_strided_slice %31 {offsets = [0, 0], sizes = [8, 8], strides = [1, 1]} : vector<8x16xf32> to vector<8x8xf32>
    %33 = vector.extract_strided_slice %31 {offsets = [0, 8], sizes = [8, 8], strides = [1, 1]} : vector<8x16xf32> to vector<8x8xf32>
    %34 = arith.addf %32, %33 : vector<8x8xf32>
    %cst_26 = arith.constant dense<0.000000e+00> : vector<8x16xf32>
    %35 = tpu.matmul %34, %31, %cst_26 {dimension_numbers = #tpu.dot_dimension_numbers<[1], [0], [0], [1], [0, 0, 1, 1], [], []>} : vector<8x8xf32>, vector<8x16xf32>, vector<8x16xf32> -> vector<8x16xf32>
    %c4 = arith.constant 4 : index
    %c0_27 = arith.constant 0 : index
    %c0_28 = arith.constant 0 : index
    %36 = vector.load %arg1[%c4, %c0_27, %c0_28] : memref<8x8x16xf32, #tpu.memory_space<vmem>>, vector<1x8x16xf32>
    %37 = vector.shape_cast %36 : vector<1x8x16xf32> to vector<8x16xf32>
    %c4_29 = arith.constant 4 : index
    %c0_30 = arith.constant 0 : index
    %c0_31 = arith.constant 0 : index
    %38 = vector.load %arg2[%c4_29, %c0_30, %c0_31] : memref<8x16x16xf32, #tpu.memory_space<vmem>>, vector<1x16x16xf32>
    %39 = vector.shape_cast %38 : vector<1x16x16xf32> to vector<16x16xf32>
    %cst_32 = arith.constant dense<0.000000e+00> : vector<8x16xf32>
    %40 = tpu.matmul %37, %39, %cst_32 {dimension_numbers = #tpu.dot_dimension_numbers<[1], [0], [0], [1], [0, 0, 1, 1], [], []>} : vector<8x16xf32>, vector<16x16xf32>, vector<8x16xf32> -> vector<8x16xf32>
    %41 = vector.extract_strided_slice %40 {offsets = [0, 0], sizes = [8, 8], strides = [1, 1]} : vector<8x16xf32> to vector<8x8xf32>
    %42 = vector.extract_strided_slice %40 {offsets = [0, 8], sizes = [8, 8], strides = [1, 1]} : vector<8x16xf32> to vector<8x8xf32>
    %43 = arith.addf %41, %42 : vector<8x8xf32>
    %cst_33 = arith.constant dense<0.000000e+00> : vector<8x16xf32>
    %44 = tpu.matmul %43, %40, %cst_33 {dimension_numbers = #tpu.dot_dimension_numbers<[1], [0], [0], [1], [0, 0, 1, 1], [], []>} : vector<8x8xf32>, vector<8x16xf32>, vector<8x16xf32> -> vector<8x16xf32>
    %c5 = arith.constant 5 : index
    %c0_34 = arith.constant 0 : index
    %c0_35 = arith.constant 0 : index
    %45 = vector.load %arg1[%c5, %c0_34, %c0_35] : memref<8x8x16xf32, #tpu.memory_space<vmem>>, vector<1x8x16xf32>
    %46 = vector.shape_cast %45 : vector<1x8x16xf32> to vector<8x16xf32>
    %c5_36 = arith.constant 5 : index
    %c0_37 = arith.constant 0 : index
    %c0_38 = arith.constant 0 : index
    %47 = vector.load %arg2[%c5_36, %c0_37, %c0_38] : memref<8x16x16xf32, #tpu.memory_space<vmem>>, vector<1x16x16xf32>
    %48 = vector.shape_cast %47 : vector<1x16x16xf32> to vector<16x16xf32>
    %cst_39 = arith.constant dense<0.000000e+00> : vector<8x16xf32>
    %49 = tpu.matmul %46, %48, %cst_39 {dimension_numbers = #tpu.dot_dimension_numbers<[1], [0], [0], [1], [0, 0, 1, 1], [], []>} : vector<8x16xf32>, vector<16x16xf32>, vector<8x16xf32> -> vector<8x16xf32>
    %50 = vector.extract_strided_slice %49 {offsets = [0, 0], sizes = [8, 8], strides = [1, 1]} : vector<8x16xf32> to vector<8x8xf32>
    %51 = vector.extract_strided_slice %49 {offsets = [0, 8], sizes = [8, 8], strides = [1, 1]} : vector<8x16xf32> to vector<8x8xf32>
    %52 = arith.addf %50, %51 : vector<8x8xf32>
    %cst_40 = arith.constant dense<0.000000e+00> : vector<8x16xf32>
    %53 = tpu.matmul %52, %49, %cst_40 {dimension_numbers = #tpu.dot_dimension_numbers<[1], [0], [0], [1], [0, 0, 1, 1], [], []>} : vector<8x8xf32>, vector<8x16xf32>, vector<8x16xf32> -> vector<8x16xf32>
    %c6 = arith.constant 6 : index
    %c0_41 = arith.constant 0 : index
    %c0_42 = arith.constant 0 : index
    %54 = vector.load %arg1[%c6, %c0_41, %c0_42] : memref<8x8x16xf32, #tpu.memory_space<vmem>>, vector<1x8x16xf32>
    %55 = vector.shape_cast %54 : vector<1x8x16xf32> to vector<8x16xf32>
    %c6_43 = arith.constant 6 : index
    %c0_44 = arith.constant 0 : index
    %c0_45 = arith.constant 0 : index
    %56 = vector.load %arg2[%c6_43, %c0_44, %c0_45] : memref<8x16x16xf32, #tpu.memory_space<vmem>>, vector<1x16x16xf32>
    %57 = vector.shape_cast %56 : vector<1x16x16xf32> to vector<16x16xf32>
    %cst_46 = arith.constant dense<0.000000e+00> : vector<8x16xf32>
    %58 = tpu.matmul %55, %57, %cst_46 {dimension_numbers = #tpu.dot_dimension_numbers<[1], [0], [0], [1], [0, 0, 1, 1], [], []>} : vector<8x16xf32>, vector<16x16xf32>, vector<8x16xf32> -> vector<8x16xf32>
    %59 = vector.extract_strided_slice %58 {offsets = [0, 0], sizes = [8, 8], strides = [1, 1]} : vector<8x16xf32> to vector<8x8xf32>
    %60 = vector.extract_strided_slice %58 {offsets = [0, 8], sizes = [8, 8], strides = [1, 1]} : vector<8x16xf32> to vector<8x8xf32>
    %61 = arith.addf %59, %60 : vector<8x8xf32>
    %cst_47 = arith.constant dense<0.000000e+00> : vector<8x16xf32>
    %62 = tpu.matmul %61, %58, %cst_47 {dimension_numbers = #tpu.dot_dimension_numbers<[1], [0], [0], [1], [0, 0, 1, 1], [], []>} : vector<8x8xf32>, vector<8x16xf32>, vector<8x16xf32> -> vector<8x16xf32>
    %c7 = arith.constant 7 : index
    %c0_48 = arith.constant 0 : index
    %c0_49 = arith.constant 0 : index
    %63 = vector.load %arg1[%c7, %c0_48, %c0_49] : memref<8x8x16xf32, #tpu.memory_space<vmem>>, vector<1x8x16xf32>
    %64 = vector.shape_cast %63 : vector<1x8x16xf32> to vector<8x16xf32>
    %c7_50 = arith.constant 7 : index
    %c0_51 = arith.constant 0 : index
    %c0_52 = arith.constant 0 : index
    %65 = vector.load %arg2[%c7_50, %c0_51, %c0_52] : memref<8x16x16xf32, #tpu.memory_space<vmem>>, vector<1x16x16xf32>
    %66 = vector.shape_cast %65 : vector<1x16x16xf32> to vector<16x16xf32>
    %cst_53 = arith.constant dense<0.000000e+00> : vector<8x16xf32>
    %67 = tpu.matmul %64, %66, %cst_53 {dimension_numbers = #tpu.dot_dimension_numbers<[1], [0], [0], [1], [0, 0, 1, 1], [], []>} : vector<8x16xf32>, vector<16x16xf32>, vector<8x16xf32> -> vector<8x16xf32>
    %68 = vector.extract_strided_slice %67 {offsets = [0, 0], sizes = [8, 8], strides = [1, 1]} : vector<8x16xf32> to vector<8x8xf32>
    %69 = vector.extract_strided_slice %67 {offsets = [0, 8], sizes = [8, 8], strides = [1, 1]} : vector<8x16xf32> to vector<8x8xf32>
    %70 = arith.addf %68, %69 : vector<8x8xf32>
    %cst_54 = arith.constant dense<0.000000e+00> : vector<8x16xf32>
    %71 = tpu.matmul %70, %67, %cst_54 {dimension_numbers = #tpu.dot_dimension_numbers<[1], [0], [0], [1], [0, 0, 1, 1], [], []>} : vector<8x8xf32>, vector<8x16xf32>, vector<8x16xf32> -> vector<8x16xf32>
    %72 = tpu.concatenate %8, %17, %26, %35, %44, %53, %62, %71 in 1 : vector<8x16xf32>, vector<8x16xf32>, vector<8x16xf32>, vector<8x16xf32>, vector<8x16xf32>, vector<8x16xf32>, vector<8x16xf32>, vector<8x16xf32> -> vector<8x128xf32>
    %c0_55 = arith.constant 0 : index
    %c0_56 = arith.constant 0 : index
    %73 = vector.load %arg3[%c0_55, %c0_56] : memref<16x128xf32, #tpu.memory_space<vmem>>, vector<8x128xf32>
    tpu.vector_store %arg3[%c0_55, %c0_56], %72 {strides = array<i32>} : memref<16x128xf32, #tpu.memory_space<vmem>>, vector<8x128xf32>,
    %c8 = arith.constant 8 : index
    %c0_57 = arith.constant 0 : index
    %74 = vector.load %arg3[%c8, %c0_57] : memref<16x128xf32, #tpu.memory_space<vmem>>, vector<8x128xf32>
    tpu.vector_store %arg3[%c8, %c0_57], %72 {strides = array<i32>} : memref<16x128xf32, #tpu.memory_space<vmem>>, vector<8x128xf32>,
    return
  }
  func.func @transform_0(%arg0: i32) -> (i32, i32, i32) {
    %c0_i32 = arith.constant 0 : i32
    %c0_i32_0 = arith.constant 0 : i32
    %c0_i32_1 = arith.constant 0 : i32
    return %arg0, %c0_i32, %c0_i32_0 : i32, i32, i32
  }
  func.func @transform_1(%arg0: i32) -> (i32, i32, i32) {
    %c0_i32 = arith.constant 0 : i32
    %c0_i32_0 = arith.constant 0 : i32
    %c0_i32_1 = arith.constant 0 : i32
    return %arg0, %c0_i32, %c0_i32_0 : i32, i32, i32
  }
  func.func @transform_2(%arg0: i32) -> (i32, i32) {
    %c0_i32 = arith.constant 0 : i32
    %c0_i32_0 = arith.constant 0 : i32
    return %c0_i32, %arg0 : i32, i32
  }
}

</mosaic_0001>

<llo_original>
// kernel: tpu_custom_call.1
$region0: #{tpu_custom_call.1}
  #allocation0 [shape = 'u32[]', space=smem, size = 0x4, offset = 0x4, fixed_abs, tag = 'smem constant byte address 0x4 - core index']
  #allocation1 [shape = 'u32[144,128]{1,0:T(1,128)}', space=vmem, size = 0x12000, scoped, tag = 'internal scratch']
  %s0 = inlined_call_operand.hbm [shape: f32[16,8,16], index: 0, kind: input, shape index: {}]
  %s1 = inlined_call_operand.hbm [shape: f32[16,16,16], index: 1, kind: input, shape index: {}]
  %s2 = inlined_call_operand.hbm [shape: f32[16,256], index: 2, kind: output, shape index: {}]
  %s3 = sld [smem:[#allocation0]]
  $region49: #{tpu_custom_call.1} parent=0
    _
  %s5 = ssub.s32 1, %s3
  %s6 = scalar_select 0, %s5, %s3
  $region1: #{tpu_custom_call.1} parent=0
    #allocation2 [shape = 'u8[65536]{0}', space=vmem, size = 0x10000, scoped, tag = 'input window, operand 0']
    #allocation3 [shape = 's32[2]{0}', space=sflag, size = 0x8, scoped, tag = 'scoped memory for tpu_custom_call.1']
    #allocation4 [shape = 's32[2]{0}', space=sflag, size = 0x8, scoped, tag = 'scoped memory for tpu_custom_call.1']
    #allocation5 [shape = 'u8[131072]{0}', space=vmem, size = 0x20000, scoped, tag = 'input window, operand 1']
    #allocation6 [shape = 's32[2]{0}', space=sflag, size = 0x8, scoped, tag = 'scoped memory for tpu_custom_call.1']
    #allocation7 [shape = 'u8[16384]{0}', space=vmem, size = 0x4000, scoped, tag = 'output window, operand 0']
    %7 = vsyncpa [#allocation3], 0
    %s8 = scalar_lea.sflag [#allocation3], 1
    %9 = vsyncpa %s8, 0
    %10 = vsyncpa [#allocation6], 0
    %s11 = scalar_lea.sflag [#allocation6], 1
    %12 = vsyncpa %s11, 0
    %13 = vsyncpa [#allocation4], 0
    %s14 = scalar_lea.sflag [#allocation4], 1
    %15 = vsyncpa %s14, 0
    loop: start=0, step=1, limit=4
    $region2: #{tpu_custom_call.1} parent=1 // loop_pre_header
      _
    $region3: #{tpu_custom_call.1} parent=1 // loop_header
      %s17 = sphi 0, %s21
      %p18 = scmp.ge.s32.totalorder %s17, 4
      %s27 = sphi 0, %s29
      %s30 = sphi 0, %s27
      %s31 = sphi 0, %s30
      %s47 = sphi 0, %s31
      %s53 = sphi 0, %s55
      %s56 = sphi 0, %s53
      %s57 = sphi 0, %s56
      %s73 = sphi 0, %s57
      %s79 = sphi 0, %s81
      %s82 = sphi 0, %s79
      %s83 = sphi 0, %s82
      %s99 = sphi 0, %s83
    $region4: #{tpu_custom_call.1} parent=1 // loop_header_branch
      %20 = sbr.rel (%p18) target = $region8
    $region5: #{tpu_custom_call.1} parent=1 // loop_body
      %s22 = ssub.s32 %s17, 1
      %s23 = ssub.s32 %s17, 2
      %s24 = sadd.s32 %s17, 1
      %s25 = ssub.s32 %s17, %s24
      %p26 = scmp.eq.s32.totalorder %s25, 0
      %s28 = sadd.s32 %s27, 1
      %s29 = scalar_select %p26, %s27, %s28
      %p32 = pneg %p26
      %p33 = scmp.eq.s32.totalorder %s17, 1
      %p34 = por %p32, %p33
      %p35 = scmp.ne.s32.totalorder %s27, %s30
      %p36 = scmp.eq.s32.totalorder %s17, 0
      %p37 = por %p35, %p36
      %p38 = scmp.ne.s32.totalorder %s27, %s30
      %p39 = scmp.eq.s32.totalorder %s22, 1
      %p40 = por %p38, %p39
      %p41 = scmp.ne.s32.totalorder %s30, %s31
      %p42 = scmp.eq.s32.totalorder %s22, 0
      %p43 = por %p41, %p42
      %p44 = scmp.ne.s32.totalorder %s30, %s31
      %p45 = scmp.eq.s32.totalorder %s23, 1
      %p46 = por %p44, %p45
      %p48 = scmp.ne.s32.totalorder %s31, %s47
      %p49 = scmp.eq.s32.totalorder %s23, 0
      %p50 = por %p48, %p49
      %s51 = ssub.s32 %s17, %s24
      %p52 = scmp.eq.s32.totalorder %s51, 0
      %s54 = sadd.s32 %s53, 1
      %s55 = scalar_select %p52, %s53, %s54
      %p58 = pneg %p52
      %p59 = scmp.eq.s32.totalorder %s17, 1
      %p60 = por %p58, %p59
      %p61 = scmp.ne.s32.totalorder %s53, %s56
      %p62 = scmp.eq.s32.totalorder %s17, 0
      %p63 = por %p61, %p62
      %p64 = scmp.ne.s32.totalorder %s53, %s56
      %p65 = scmp.eq.s32.totalorder %s22, 1
      %p66 = por %p64, %p65
      %p67 = scmp.ne.s32.totalorder %s56, %s57
      %p68 = scmp.eq.s32.totalorder %s22, 0
      %p69 = por %p67, %p68
      %p70 = scmp.ne.s32.totalorder %s56, %s57
      %p71 = scmp.eq.s32.totalorder %s23, 1
      %p72 = por %p70, %p71
      %p74 = scmp.ne.s32.totalorder %s57, %s73
      %p75 = scmp.eq.s32.totalorder %s23, 0
      %p76 = por %p74, %p75
      %s77 = ssub.s32 %s17, %s24
      %p78 = scmp.eq.s32.totalorder %s77, 0
      %s80 = sadd.s32 %s79, 1
      %s81 = scalar_select %p78, %s79, %s80
      %p84 = pneg %p78
      %p85 = scmp.eq.s32.totalorder %s17, 1
      %p86 = por %p84, %p85
      %p87 = scmp.ne.s32.totalorder %s79, %s82
      %p88 = scmp.eq.s32.totalorder %s17, 0
      %p89 = por %p87, %p88
      %p90 = scmp.ne.s32.totalorder %s79, %s82
      %p91 = scmp.eq.s32.totalorder %s22, 1
      %p92 = por %p90, %p91
      %p93 = scmp.ne.s32.totalorder %s82, %s83
      %p94 = scmp.eq.s32.totalorder %s22, 0
      %p95 = por %p93, %p94
      %p96 = scmp.ne.s32.totalorder %s82, %s83
      %p97 = scmp.eq.s32.totalorder %s23, 1
      %p98 = por %p96, %p97
      %p100 = scmp.ne.s32.totalorder %s83, %s99
      %p101 = scmp.eq.s32.totalorder %s23, 0
      %p102 = por %p100, %p101
      %p103 = scmp.le.s32.totalorder 1, %s17
      %p104 = scmp.lt.s32.totalorder %s17, 3
      %p105 = pnand %p103, %p104
      %p106 = pneg %p105
      // Predicated region
      $region9: #{tpu_custom_call.1} parent=5 // pred_check
        _
      $region10: #{tpu_custom_call.1} parent=5 // pred_check_branch
        %108 = sbr.rel (%p105) target = $region12
      $region11: #{tpu_custom_call.1} parent=5 // pred_region
        %s109 = ssub.s32 %s17, 1
      $region12: #{tpu_custom_call.1} parent=5 // pred_fallthru
        _
      %p110 = scmp.lt.s32.totalorder %s17, 2
      // Predicated region
      $region13: #{tpu_custom_call.1} parent=5 // pred_check
        %p111 = pneg %p110
      $region14: #{tpu_custom_call.1} parent=5 // pred_check_branch
        %113 = sbr.rel (%p111) target = $region16
      $region15: #{tpu_custom_call.1} parent=5 // pred_region
        // Predicated region
        $region17: #{tpu_custom_call.1} parent=15 // pred_check
          %p114 = pneg %p37
        $region18: #{tpu_custom_call.1} parent=15 // pred_check_branch
          %116 = sbr.rel (%p114) target = $region20
        $region19: #{tpu_custom_call.1} parent=15 // pred_region
          %s117 = sand.u32 %s27, 1
          %s118 = scalar_lea.sflag [#allocation3], %s117
          %s119 = sand.u32 %s27, 1
          %s120 = smul.addr %s119, 64
          %s121 = scalar_lea.vmem [#allocation2], %s120
          %s122 = smul.u32 8, %s17
          %s124 = ssub.s32 1024, 1024
          %125 = vsyncadd %s118, %s124
          %s126 = smul.addr %s122, 128
          %s127 = scalar_lea.hbm %s0, %s126
          %s128 = sshll.u32 %s121, 4
          %s129 = int_to_ptr.vmem [resolvable:$true] %s128
          %134 = dma.hbm_to_vmem [thread:$0]  %s127, 1024, %s129, %s118, 128, 128, 8
        $region20: #{tpu_custom_call.1} parent=15 // pred_fallthru
          _
        // Predicated region
        $region21: #{tpu_custom_call.1} parent=15 // pred_check
          %p135 = pneg %p63
        $region22: #{tpu_custom_call.1} parent=15 // pred_check_branch
          %137 = sbr.rel (%p135) target = $region24
        $region23: #{tpu_custom_call.1} parent=15 // pred_region
          %s138 = sand.u32 %s53, 1
          %s139 = scalar_lea.sflag [#allocation6], %s138
          %s140 = sand.u32 %s53, 1
          %s141 = smul.addr %s140, 128
          %s142 = scalar_lea.vmem [#allocation5], %s141
          %s143 = smul.u32 8, %s17
          %s145 = ssub.s32 2048, 2048
          %146 = vsyncadd %s139, %s145
          %s147 = smul.addr %s143, 2
          %s148 = smul.addr %s147, 128
          %s149 = scalar_lea.hbm %s1, %s148
          %s150 = sshll.u32 %s142, 4
          %s151 = int_to_ptr.vmem [resolvable:$true] %s150
          %156 = dma.hbm_to_vmem [thread:$0]  %s149, 2048, %s151, %s139, 128, 128, 8
        $region24: #{tpu_custom_call.1} parent=15 // pred_fallthru
          _
      $region16: #{tpu_custom_call.1} parent=5 // pred_fallthru
        _
      %p157 = scmp.le.s32.totalorder 1, %s17
      %p158 = scmp.lt.s32.totalorder %s17, 3
      %p159 = pnand %p157, %p158
      %p160 = pneg %p159
      // Predicated region
      $region25: #{tpu_custom_call.1} parent=5 // pred_check
        _
      $region26: #{tpu_custom_call.1} parent=5 // pred_check_branch
        %162 = sbr.rel (%p159) target = $region28
      $region27: #{tpu_custom_call.1} parent=5 // pred_region
        %s163 = ssub.s32 %s17, 1
        %s164 = sand.u32 %s30, 1
        %s165 = scalar_lea.sflag [#allocation3], %s164
        %s166 = sand.u32 %s30, 1
        %s167 = smul.addr %s166, 64
        %s168 = scalar_lea.vmem [#allocation2], %s167
        // Predicated region
        $region29: #{tpu_custom_call.1} parent=27 // pred_check
          %p169 = pneg %p43
        $region30: #{tpu_custom_call.1} parent=27 // pred_check_branch
          %171 = sbr.rel (%p169) target = $region32
        $region31: #{tpu_custom_call.1} parent=27 // pred_region
          %172 = dma.done %s165, 1024
        $region32: #{tpu_custom_call.1} parent=27 // pred_fallthru
          _
        %s173 = sand.u32 %s56, 1
        %s174 = scalar_lea.sflag [#allocation6], %s173
        %s175 = sand.u32 %s56, 1
        %s176 = smul.addr %s175, 128
        %s177 = scalar_lea.vmem [#allocation5], %s176
        // Predicated region
        $region33: #{tpu_custom_call.1} parent=27 // pred_check
          %p178 = pneg %p69
        $region34: #{tpu_custom_call.1} parent=27 // pred_check_branch
          %180 = sbr.rel (%p178) target = $region36
        $region35: #{tpu_custom_call.1} parent=27 // pred_region
          %181 = dma.done %s174, 2048
        $region36: #{tpu_custom_call.1} parent=27 // pred_fallthru
          _
        %s182 = sand.u32 %s30, 1
        %s183 = scalar_lea.sflag [#allocation3], %s182
        %s184 = sand.u32 %s30, 1
        %s185 = smul.addr %s184, 64
        %s186 = scalar_lea.vmem [#allocation2], %s185
        %p187 = pneg %p43
        %p188 = pneg %p40
        %s189 = sand.u32 %s56, 1
        %s190 = scalar_lea.sflag [#allocation6], %s189
        %s191 = sand.u32 %s56, 1
        %s192 = smul.addr %s191, 128
        %s193 = scalar_lea.vmem [#allocation5], %s192
        %p194 = pneg %p69
        %p195 = pneg %p66
        %p196 = pneg %p95
        %p197 = pneg %p92
        %s198 = sand.u32 %s82, 1
        %s199 = scalar_lea.sflag [#allocation4], %s198
        %s200 = sand.u32 %s82, 1
        %s201 = smul.addr %s200, 16
        %s202 = scalar_lea.vmem [#allocation7], %s201
        %s203 = smul.u32 8, %s22
        %s204 = smul.u32 8, %s22
        %v205 = vld [vmem:[%s168] sm:$0xff]
        %v206 = vld [vmem:[%s177] sm:$0xff]
        %v207 = vld [vmem:[%s177 + $0x8] sm:$0xff]
        %vm208 = vcmask 130048
        %v210 = vsel %vm208, %v205, 0
        %212 = vmatprep.subr.mxu0 0.0
        %213 = vmatpush1.msra.mxu0 0.0
        %214 = vmatprep.subr.mxu0 0.0
        %215 = vmatpush1.msra.mxu0 0.0
        %216 = vmatprep.subr.mxu0 0.0
        %217 = vmatpush1.msra.mxu0 0.0
        %218 = vmatprep.subr.mxu0 0.0
        %219 = vmatpush1.msra.mxu0 0.0
        %220 = vmatprep.subr.mxu0 0.0
        %221 = vmatpush1.msra.mxu0 0.0
        %222 = vmatprep.subr.mxu0 0.0
        %223 = vmatpush1.msra.mxu0 0.0
        %224 = vmatprep.subr.mxu0 0.0
        %225 = vmatpush1.msra.mxu0 0.0
        %226 = vmatprep.subr.mxu0 0.0
        %227 = vmatpush1.msra.mxu0 0.0
        %228 = vmatprep.subr.mxu0 0.0
        %229 = vmatpush1.msra.mxu0 0.0
        %230 = vmatprep.subr.mxu0 0.0
        %231 = vmatpush1.msra.mxu0 0.0
        %232 = vmatprep.subr.mxu0 0.0
        %233 = vmatpush1.msra.mxu0 0.0
        %234 = vmatprep.subr.mxu0 0.0
        %235 = vmatpush1.msra.mxu0 0.0
        %236 = vmatprep.subr.mxu0 0.0
        %237 = vmatpush1.msra.mxu0 0.0
        %238 = vmatprep.subr.mxu0 0.0
        %239 = vmatpush1.msra.mxu0 0.0
        %240 = vmatprep.subr.mxu0 0.0
        %241 = vmatpush1.msra.mxu0 %v207
        %242 = vmatprep.subr.mxu0 0.0
        %243 = vmatpush1.msra.mxu0 %v206
        %244 = vmatprep.subr.mxu0 0.0
        %245 = vmatpush2.msra.mxu0 0.0
        %246 = vmatprep.subr.mxu0 0.0
        %247 = vmatpush2.msra.mxu0 0.0
        %248 = vmatprep.subr.mxu0 0.0
        %249 = vmatpush2.msra.mxu0 0.0
        %250 = vmatprep.subr.mxu0 0.0
        %251 = vmatpush2.msra.mxu0 0.0
        %252 = vmatprep.subr.mxu0 0.0
        %253 = vmatpush2.msra.mxu0 0.0
        %254 = vmatprep.subr.mxu0 0.0
        %255 = vmatpush2.msra.mxu0 0.0
        %256 = vmatprep.subr.mxu0 0.0
        %257 = vmatpush2.msra.mxu0 0.0
        %258 = vmatprep.subr.mxu0 0.0
        %259 = vmatpush2.msra.mxu0 0.0
        %260 = vmatprep.subr.mxu0 0.0
        %261 = vmatpush2.msra.mxu0 0.0
        %262 = vmatprep.subr.mxu0 0.0
        %263 = vmatpush2.msra.mxu0 0.0
        %264 = vmatprep.subr.mxu0 0.0
        %265 = vmatpush2.msra.mxu0 0.0
        %266 = vmatprep.subr.mxu0 0.0
        %267 = vmatpush2.msra.mxu0 0.0
        %268 = vmatprep.subr.mxu0 0.0
        %269 = vmatpush2.msra.mxu0 0.0
        %270 = vmatprep.subr.mxu0 0.0
        %271 = vmatpush2.msra.mxu0 0.0
        %272 = vmatprep.subr.mxu0 0.0
        %273 = vmatpush2.msra.mxu0 0.0
        %274 = vmatprep.subr.mxu0 0.0
        %275 = vmatpush2.msra.mxu0 0.0
        %276 = vmatprep.mubr.f32.mxu0 0.0
        %277 = vmatmul.mubr.f32.gmra.mxu0 %v210
        %v278 = vpop.f32.mrf.mxu0
        %v279 = vadd.f32 0.0, %v278
        %v280 = vpop.f32.mrf.mxu0
        %281 = vdwg.mxu0
        %283 = vrot.lane.b32.xlu0 %v279, 120
        %v284 = vpop.permute.xlu0 %283
        %v286 = vadd.f32 %v279, %v284
        %vm287 = vcmask 64512
        %v289 = vsel %vm287, %v286, 0
        %291 = vmatprep.subr.mxu0 0.0
        %292 = vmatpush1.msra.mxu0 0.0
        %293 = vmatprep.subr.mxu0 0.0
        %294 = vmatpush1.msra.mxu0 0.0
        %295 = vmatprep.subr.mxu0 0.0
        %296 = vmatpush1.msra.mxu0 0.0
        %297 = vmatprep.subr.mxu0 0.0
        %298 = vmatpush1.msra.mxu0 0.0
        %299 = vmatprep.subr.mxu0 0.0
        %300 = vmatpush1.msra.mxu0 0.0
        %301 = vmatprep.subr.mxu0 0.0
        %302 = vmatpush1.msra.mxu0 0.0
        %303 = vmatprep.subr.mxu0 0.0
        %304 = vmatpush1.msra.mxu0 0.0
        %305 = vmatprep.subr.mxu0 0.0
        %306 = vmatpush1.msra.mxu0 0.0
        %307 = vmatprep.subr.mxu0 0.0
        %308 = vmatpush1.msra.mxu0 0.0
        %309 = vmatprep.subr.mxu0 0.0
        %310 = vmatpush1.msra.mxu0 0.0
        %311 = vmatprep.subr.mxu0 0.0
        %312 = vmatpush1.msra.mxu0 0.0
        %313 = vmatprep.subr.mxu0 0.0
        %314 = vmatpush1.msra.mxu0 0.0
        %315 = vmatprep.subr.mxu0 0.0
        %316 = vmatpush1.msra.mxu0 0.0
        %317 = vmatprep.subr.mxu0 0.0
        %318 = vmatpush1.msra.mxu0 0.0
        %319 = vmatprep.subr.mxu0 0.0
        %320 = vmatpush1.msra.mxu0 0.0
        %321 = vmatprep.subr.mxu0 0.0
        %322 = vmatpush1.msra.mxu0 %v279
        %323 = vmatprep.subr.mxu0 0.0
        %324 = vmatpush2.msra.mxu0 0.0
        %325 = vmatprep.subr.mxu0 0.0
        %326 = vmatpush2.msra.mxu0 0.0
        %327 = vmatprep.subr.mxu0 0.0
        %328 = vmatpush2.msra.mxu0 0.0
        %329 = vmatprep.subr.mxu0 0.0
        %330 = vmatpush2.msra.mxu0 0.0
        %331 = vmatprep.subr.mxu0 0.0
        %332 = vmatpush2.msra.mxu0 0.0
        %333 = vmatprep.subr.mxu0 0.0
        %334 = vmatpush2.msra.mxu0 0.0
        %335 = vmatprep.subr.mxu0 0.0
        %336 = vmatpush2.msra.mxu0 0.0
        %337 = vmatprep.subr.mxu0 0.0
        %338 = vmatpush2.msra.mxu0 0.0
        %339 = vmatprep.subr.mxu0 0.0
        %340 = vmatpush2.msra.mxu0 0.0
        %341 = vmatprep.subr.mxu0 0.0
        %342 = vmatpush2.msra.mxu0 0.0
        %343 = vmatprep.subr.mxu0 0.0
        %344 = vmatpush2.msra.mxu0 0.0
        %345 = vmatprep.subr.mxu0 0.0
        %346 = vmatpush2.msra.mxu0 0.0
        %347 = vmatprep.subr.mxu0 0.0
        %348 = vmatpush2.msra.mxu0 0.0
        %349 = vmatprep.subr.mxu0 0.0
        %350 = vmatpush2.msra.mxu0 0.0
        %351 = vmatprep.subr.mxu0 0.0
        %352 = vmatpush2.msra.mxu0 0.0
        %353 = vmatprep.subr.mxu0 0.0
        %354 = vmatpush2.msra.mxu0 0.0
        %355 = vmatprep.mubr.f32.mxu0 0.0
        %356 = vmatmul.mubr.f32.gmra.mxu0 %v289
        %v357 = vpop.f32.mrf.mxu0
        %v358 = vadd.f32 0.0, %v357
        %v359 = vpop.f32.mrf.mxu0
        %360 = vdwg.mxu0
        %s361 = scalar_lea.vmem %s168, 8 [#allocation2]
        %v362 = vld [vmem:[%s361] sm:$0xff]
        %s363 = scalar_lea.vmem %s177, 16 [#allocation5]
        %v364 = vld [vmem:[%s363] sm:$0xff]
        %v365 = vld [vmem:[%s363 + $0x8] sm:$0xff]
        %v367 = vsel %vm208, %v362, 0
        %369 = vmatprep.subr.mxu0 0.0
        %370 = vmatpush1.msra.mxu0 0.0
        %371 = vmatprep.subr.mxu0 0.0
        %372 = vmatpush1.msra.mxu0 0.0
        %373 = vmatprep.subr.mxu0 0.0
        %374 = vmatpush1.msra.mxu0 0.0
        %375 = vmatprep.subr.mxu0 0.0
        %376 = vmatpush1.msra.mxu0 0.0
        %377 = vmatprep.subr.mxu0 0.0
        %378 = vmatpush1.msra.mxu0 0.0
        %379 = vmatprep.subr.mxu0 0.0
        %380 = vmatpush1.msra.mxu0 0.0
        %381 = vmatprep.subr.mxu0 0.0
        %382 = vmatpush1.msra.mxu0 0.0
        %383 = vmatprep.subr.mxu0 0.0
        %384 = vmatpush1.msra.mxu0 0.0
        %385 = vmatprep.subr.mxu0 0.0
        %386 = vmatpush1.msra.mxu0 0.0
        %387 = vmatprep.subr.mxu0 0.0
        %388 = vmatpush1.msra.mxu0 0.0
        %389 = vmatprep.subr.mxu0 0.0
        %390 = vmatpush1.msra.mxu0 0.0
        %391 = vmatprep.subr.mxu0 0.0
        %392 = vmatpush1.msra.mxu0 0.0
        %393 = vmatprep.subr.mxu0 0.0
        %394 = vmatpush1.msra.mxu0 0.0
        %395 = vmatprep.subr.mxu0 0.0
        %396 = vmatpush1.msra.mxu0 0.0
        %397 = vmatprep.subr.mxu0 0.0
        %398 = vmatpush1.msra.mxu0 %v365
        %399 = vmatprep.subr.mxu0 0.0
        %400 = vmatpush1.msra.mxu0 %v364
        %401 = vmatprep.subr.mxu0 0.0
        %402 = vmatpush2.msra.mxu0 0.0
        %403 = vmatprep.subr.mxu0 0.0
        %404 = vmatpush2.msra.mxu0 0.0
        %405 = vmatprep.subr.mxu0 0.0
        %406 = vmatpush2.msra.mxu0 0.0
        %407 = vmatprep.subr.mxu0 0.0
        %408 = vmatpush2.msra.mxu0 0.0
        %409 = vmatprep.subr.mxu0 0.0
        %410 = vmatpush2.msra.mxu0 0.0
        %411 = vmatprep.subr.mxu0 0.0
        %412 = vmatpush2.msra.mxu0 0.0
        %413 = vmatprep.subr.mxu0 0.0
        %414 = vmatpush2.msra.mxu0 0.0
        %415 = vmatprep.subr.mxu0 0.0
        %416 = vmatpush2.msra.mxu0 0.0
        %417 = vmatprep.subr.mxu0 0.0
        %418 = vmatpush2.msra.mxu0 0.0
        %419 = vmatprep.subr.mxu0 0.0
        %420 = vmatpush2.msra.mxu0 0.0
        %421 = vmatprep.subr.mxu0 0.0
        %422 = vmatpush2.msra.mxu0 0.0
        %423 = vmatprep.subr.mxu0 0.0
        %424 = vmatpush2.msra.mxu0 0.0
        %425 = vmatprep.subr.mxu0 0.0
        %426 = vmatpush2.msra.mxu0 0.0
        %427 = vmatprep.subr.mxu0 0.0
        %428 = vmatpush2.msra.mxu0 0.0
        %429 = vmatprep.subr.mxu0 0.0
        %430 = vmatpush2.msra.mxu0 0.0
        %431 = vmatprep.subr.mxu0 0.0
        %432 = vmatpush2.msra.mxu0 0.0
        %433 = vmatprep.mubr.f32.mxu0 0.0
        %434 = vmatmul.mubr.f32.gmra.mxu0 %v367
        %v435 = vpop.f32.mrf.mxu0
        %v436 = vadd.f32 0.0, %v435
        %v437 = vpop.f32.mrf.mxu0
        %438 = vdwg.mxu0
        %440 = vrot.lane.b32.xlu0 %v436, 120
        %v441 = vpop.permute.xlu0 %440
        %v443 = vadd.f32 %v436, %v441
        %v445 = vsel %vm287, %v443, 0
        %447 = vmatprep.subr.mxu0 0.0
        %448 = vmatpush1.msra.mxu0 0.0
        %449 = vmatprep.subr.mxu0 0.0
        %450 = vmatpush1.msra.mxu0 0.0
        %451 = vmatprep.subr.mxu0 0.0
        %452 = vmatpush1.msra.mxu0 0.0
        %453 = vmatprep.subr.mxu0 0.0
        %454 = vmatpush1.msra.mxu0 0.0
        %455 = vmatprep.subr.mxu0 0.0
        %456 = vmatpush1.msra.mxu0 0.0
        %457 = vmatprep.subr.mxu0 0.0
        %458 = vmatpush1.msra.mxu0 0.0
        %459 = vmatprep.subr.mxu0 0.0
        %460 = vmatpush1.msra.mxu0 0.0
        %461 = vmatprep.subr.mxu0 0.0
        %462 = vmatpush1.msra.mxu0 0.0
        %463 = vmatprep.subr.mxu0 0.0
        %464 = vmatpush1.msra.mxu0 0.0
        %465 = vmatprep.subr.mxu0 0.0
        %466 = vmatpush1.msra.mxu0 0.0
        %467 = vmatprep.subr.mxu0 0.0
        %468 = vmatpush1.msra.mxu0 0.0
        %469 = vmatprep.subr.mxu0 0.0
        %470 = vmatpush1.msra.mxu0 0.0
        %471 = vmatprep.subr.mxu0 0.0
        %472 = vmatpush1.msra.mxu0 0.0
        %473 = vmatprep.subr.mxu0 0.0
        %474 = vmatpush1.msra.mxu0 0.0
        %475 = vmatprep.subr.mxu0 0.0
        %476 = vmatpush1.msra.mxu0 0.0
        %477 = vmatprep.subr.mxu0 0.0
        %478 = vmatpush1.msra.mxu0 %v436
        %479 = vmatprep.subr.mxu0 0.0
        %480 = vmatpush2.msra.mxu0 0.0
        %481 = vmatprep.subr.mxu0 0.0
        %482 = vmatpush2.msra.mxu0 0.0
        %483 = vmatprep.subr.mxu0 0.0
        %484 = vmatpush2.msra.mxu0 0.0
        %485 = vmatprep.subr.mxu0 0.0
        %486 = vmatpush2.msra.mxu0 0.0
        %487 = vmatprep.subr.mxu0 0.0
        %488 = vmatpush2.msra.mxu0 0.0
        %489 = vmatprep.subr.mxu0 0.0
        %490 = vmatpush2.msra.mxu0 0.0
        %491 = vmatprep.subr.mxu0 0.0
        %492 = vmatpush2.msra.mxu0 0.0
        %493 = vmatprep.subr.mxu0 0.0
        %494 = vmatpush2.msra.mxu0 0.0
        %495 = vmatprep.subr.mxu0 0.0
        %496 = vmatpush2.msra.mxu0 0.0
        %497 = vmatprep.subr.mxu0 0.0
        %498 = vmatpush2.msra.mxu0 0.0
        %499 = vmatprep.subr.mxu0 0.0
        %500 = vmatpush2.msra.mxu0 0.0
        %501 = vmatprep.subr.mxu0 0.0
        %502 = vmatpush2.msra.mxu0 0.0
        %503 = vmatprep.subr.mxu0 0.0
        %504 = vmatpush2.msra.mxu0 0.0
        %505 = vmatprep.subr.mxu0 0.0
        %506 = vmatpush2.msra.mxu0 0.0
        %507 = vmatprep.subr.mxu0 0.0
        %508 = vmatpush2.msra.mxu0 0.0
        %509 = vmatprep.subr.mxu0 0.0
        %510 = vmatpush2.msra.mxu0 0.0
        %511 = vmatprep.mubr.f32.mxu0 0.0
        %512 = vmatmul.mubr.f32.gmra.mxu0 %v445
        %v513 = vpop.f32.mrf.mxu0
        %v514 = vadd.f32 0.0, %v513
        %v515 = vpop.f32.mrf.mxu0
        %516 = vdwg.mxu0
        %s517 = scalar_lea.vmem %s168, 16 [#allocation2]
        %v518 = vld [vmem:[%s517] sm:$0xff]
        %s519 = scalar_lea.vmem %s177, 32 [#allocation5]
        %v520 = vld [vmem:[%s519] sm:$0xff]
        %v521 = vld [vmem:[%s519 + $0x8] sm:$0xff]
        %v523 = vsel %vm208, %v518, 0
        %525 = vmatprep.subr.mxu0 0.0
        %526 = vmatpush1.msra.mxu0 0.0
        %527 = vmatprep.subr.mxu0 0.0
        %528 = vmatpush1.msra.mxu0 0.0
        %529 = vmatprep.subr.mxu0 0.0
        %530 = vmatpush1.msra.mxu0 0.0
        %531 = vmatprep.subr.mxu0 0.0
        %532 = vmatpush1.msra.mxu0 0.0
        %533 = vmatprep.subr.mxu0 0.0
        %534 = vmatpush1.msra.mxu0 0.0
        %535 = vmatprep.subr.mxu0 0.0
        %536 = vmatpush1.msra.mxu0 0.0
        %537 = vmatprep.subr.mxu0 0.0
        %538 = vmatpush1.msra.mxu0 0.0
        %539 = vmatprep.subr.mxu0 0.0
        %540 = vmatpush1.msra.mxu0 0.0
        %541 = vmatprep.subr.mxu0 0.0
        %542 = vmatpush1.msra.mxu0 0.0
        %543 = vmatprep.subr.mxu0 0.0
        %544 = vmatpush1.msra.mxu0 0.0
        %545 = vmatprep.subr.mxu0 0.0
        %546 = vmatpush1.msra.mxu0 0.0
        %547 = vmatprep.subr.mxu0 0.0
        %548 = vmatpush1.msra.mxu0 0.0
        %549 = vmatprep.subr.mxu0 0.0
        %550 = vmatpush1.msra.mxu0 0.0
        %551 = vmatprep.subr.mxu0 0.0
        %552 = vmatpush1.msra.mxu0 0.0
        %553 = vmatprep.subr.mxu0 0.0
        %554 = vmatpush1.msra.mxu0 %v521
        %555 = vmatprep.subr.mxu0 0.0
        %556 = vmatpush1.msra.mxu0 %v520
        %557 = vmatprep.subr.mxu0 0.0
        %558 = vmatpush2.msra.mxu0 0.0
        %559 = vmatprep.subr.mxu0 0.0
        %560 = vmatpush2.msra.mxu0 0.0
        %561 = vmatprep.subr.mxu0 0.0
        %562 = vmatpush2.msra.mxu0 0.0
        %563 = vmatprep.subr.mxu0 0.0
        %564 = vmatpush2.msra.mxu0 0.0
        %565 = vmatprep.subr.mxu0 0.0
        %566 = vmatpush2.msra.mxu0 0.0
        %567 = vmatprep.subr.mxu0 0.0
        %568 = vmatpush2.msra.mxu0 0.0
        %569 = vmatprep.subr.mxu0 0.0
        %570 = vmatpush2.msra.mxu0 0.0
        %571 = vmatprep.subr.mxu0 0.0
        %572 = vmatpush2.msra.mxu0 0.0
        %573 = vmatprep.subr.mxu0 0.0
        %574 = vmatpush2.msra.mxu0 0.0
        %575 = vmatprep.subr.mxu0 0.0
        %576 = vmatpush2.msra.mxu0 0.0
        %577 = vmatprep.subr.mxu0 0.0
        %578 = vmatpush2.msra.mxu0 0.0
        %579 = vmatprep.subr.mxu0 0.0
        %580 = vmatpush2.msra.mxu0 0.0
        %581 = vmatprep.subr.mxu0 0.0
        %582 = vmatpush2.msra.mxu0 0.0
        %583 = vmatprep.subr.mxu0 0.0
        %584 = vmatpush2.msra.mxu0 0.0
        %585 = vmatprep.subr.mxu0 0.0
        %586 = vmatpush2.msra.mxu0 0.0
        %587 = vmatprep.subr.mxu0 0.0
        %588 = vmatpush2.msra.mxu0 0.0
        %589 = vmatprep.mubr.f32.mxu0 0.0
        %590 = vmatmul.mubr.f32.gmra.mxu0 %v523
        %v591 = vpop.f32.mrf.mxu0
        %v592 = vadd.f32 0.0, %v591
        %v593 = vpop.f32.mrf.mxu0
        %594 = vdwg.mxu0
        %596 = vrot.lane.b32.xlu0 %v592, 120
        %v597 = vpop.permute.xlu0 %596
        %v599 = vadd.f32 %v592, %v597
        %v601 = vsel %vm287, %v599, 0
        %603 = vmatprep.subr.mxu0 0.0
        %604 = vmatpush1.msra.mxu0 0.0
        %605 = vmatprep.subr.mxu0 0.0
        %606 = vmatpush1.msra.mxu0 0.0
        %607 = vmatprep.subr.mxu0 0.0
        %608 = vmatpush1.msra.mxu0 0.0
        %609 = vmatprep.subr.mxu0 0.0
        %610 = vmatpush1.msra.mxu0 0.0
        %611 = vmatprep.subr.mxu0 0.0
        %612 = vmatpush1.msra.mxu0 0.0
        %613 = vmatprep.subr.mxu0 0.0
        %614 = vmatpush1.msra.mxu0 0.0
        %615 = vmatprep.subr.mxu0 0.0
        %616 = vmatpush1.msra.mxu0 0.0
        %617 = vmatprep.subr.mxu0 0.0
        %618 = vmatpush1.msra.mxu0 0.0
        %619 = vmatprep.subr.mxu0 0.0
        %620 = vmatpush1.msra.mxu0 0.0
        %621 = vmatprep.subr.mxu0 0.0
        %622 = vmatpush1.msra.mxu0 0.0
        %623 = vmatprep.subr.mxu0 0.0
        %624 = vmatpush1.msra.mxu0 0.0
        %625 = vmatprep.subr.mxu0 0.0
        %626 = vmatpush1.msra.mxu0 0.0
        %627 = vmatprep.subr.mxu0 0.0
        %628 = vmatpush1.msra.mxu0 0.0
        %629 = vmatprep.subr.mxu0 0.0
        %630 = vmatpush1.msra.mxu0 0.0
        %631 = vmatprep.subr.mxu0 0.0
        %632 = vmatpush1.msra.mxu0 0.0
        %633 = vmatprep.subr.mxu0 0.0
        %634 = vmatpush1.msra.mxu0 %v592
        %635 = vmatprep.subr.mxu0 0.0
        %636 = vmatpush2.msra.mxu0 0.0
        %637 = vmatprep.subr.mxu0 0.0
        %638 = vmatpush2.msra.mxu0 0.0
        %639 = vmatprep.subr.mxu0 0.0
        %640 = vmatpush2.msra.mxu0 0.0
        %641 = vmatprep.subr.mxu0 0.0
        %642 = vmatpush2.msra.mxu0 0.0
        %643 = vmatprep.subr.mxu0 0.0
        %644 = vmatpush2.msra.mxu0 0.0
        %645 = vmatprep.subr.mxu0 0.0
        %646 = vmatpush2.msra.mxu0 0.0
        %647 = vmatprep.subr.mxu0 0.0
        %648 = vmatpush2.msra.mxu0 0.0
        %649 = vmatprep.subr.mxu0 0.0
        %650 = vmatpush2.msra.mxu0 0.0
        %651 = vmatprep.subr.mxu0 0.0
        %652 = vmatpush2.msra.mxu0 0.0
        %653 = vmatprep.subr.mxu0 0.0
        %654 = vmatpush2.msra.mxu0 0.0
        %655 = vmatprep.subr.mxu0 0.0
        %656 = vmatpush2.msra.mxu0 0.0
        %657 = vmatprep.subr.mxu0 0.0
        %658 = vmatpush2.msra.mxu0 0.0
        %659 = vmatprep.subr.mxu0 0.0
        %660 = vmatpush2.msra.mxu0 0.0
        %661 = vmatprep.subr.mxu0 0.0
        %662 = vmatpush2.msra.mxu0 0.0
        %663 = vmatprep.subr.mxu0 0.0
        %664 = vmatpush2.msra.mxu0 0.0
        %665 = vmatprep.subr.mxu0 0.0
        %666 = vmatpush2.msra.mxu0 0.0
        %667 = vmatprep.mubr.f32.mxu0 0.0
        %668 = vmatmul.mubr.f32.gmra.mxu0 %v601
        %v669 = vpop.f32.mrf.mxu0
        %v670 = vadd.f32 0.0, %v669
        %v671 = vpop.f32.mrf.mxu0
        %672 = vdwg.mxu0
        %s673 = scalar_lea.vmem %s168, 24 [#allocation2]
        %v674 = vld [vmem:[%s673] sm:$0xff]
        %s675 = scalar_lea.vmem %s177, 48 [#allocation5]
        %v676 = vld [vmem:[%s675] sm:$0xff]
        %v677 = vld [vmem:[%s675 + $0x8] sm:$0xff]
        %v679 = vsel %vm208, %v674, 0
        %681 = vmatprep.subr.mxu0 0.0
        %682 = vmatpush1.msra.mxu0 0.0
        %683 = vmatprep.subr.mxu0 0.0
        %684 = vmatpush1.msra.mxu0 0.0
        %685 = vmatprep.subr.mxu0 0.0
        %686 = vmatpush1.msra.mxu0 0.0
        %687 = vmatprep.subr.mxu0 0.0
        %688 = vmatpush1.msra.mxu0 0.0
        %689 = vmatprep.subr.mxu0 0.0
        %690 = vmatpush1.msra.mxu0 0.0
        %691 = vmatprep.subr.mxu0 0.0
        %692 = vmatpush1.msra.mxu0 0.0
        %693 = vmatprep.subr.mxu0 0.0
        %694 = vmatpush1.msra.mxu0 0.0
        %695 = vmatprep.subr.mxu0 0.0
        %696 = vmatpush1.msra.mxu0 0.0
        %697 = vmatprep.subr.mxu0 0.0
        %698 = vmatpush1.msra.mxu0 0.0
        %699 = vmatprep.subr.mxu0 0.0
        %700 = vmatpush1.msra.mxu0 0.0
        %701 = vmatprep.subr.mxu0 0.0
        %702 = vmatpush1.msra.mxu0 0.0
        %703 = vmatprep.subr.mxu0 0.0
        %704 = vmatpush1.msra.mxu0 0.0
        %705 = vmatprep.subr.mxu0 0.0
        %706 = vmatpush1.msra.mxu0 0.0
        %707 = vmatprep.subr.mxu0 0.0
        %708 = vmatpush1.msra.mxu0 0.0
        %709 = vmatprep.subr.mxu0 0.0
        %710 = vmatpush1.msra.mxu0 %v677
        %711 = vmatprep.subr.mxu0 0.0
        %712 = vmatpush1.msra.mxu0 %v676
        %713 = vmatprep.subr.mxu0 0.0
        %714 = vmatpush2.msra.mxu0 0.0
        %715 = vmatprep.subr.mxu0 0.0
        %716 = vmatpush2.msra.mxu0 0.0
        %717 = vmatprep.subr.mxu0 0.0
        %718 = vmatpush2.msra.mxu0 0.0
        %719 = vmatprep.subr.mxu0 0.0
        %720 = vmatpush2.msra.mxu0 0.0
        %721 = vmatprep.subr.mxu0 0.0
        %722 = vmatpush2.msra.mxu0 0.0
        %723 = vmatprep.subr.mxu0 0.0
        %724 = vmatpush2.msra.mxu0 0.0
        %725 = vmatprep.subr.mxu0 0.0
        %726 = vmatpush2.msra.mxu0 0.0
        %727 = vmatprep.subr.mxu0 0.0
        %728 = vmatpush2.msra.mxu0 0.0
        %729 = vmatprep.subr.mxu0 0.0
        %730 = vmatpush2.msra.mxu0 0.0
        %731 = vmatprep.subr.mxu0 0.0
        %732 = vmatpush2.msra.mxu0 0.0
        %733 = vmatprep.subr.mxu0 0.0
        %734 = vmatpush2.msra.mxu0 0.0
        %735 = vmatprep.subr.mxu0 0.0
        %736 = vmatpush2.msra.mxu0 0.0
        %737 = vmatprep.subr.mxu0 0.0
        %738 = vmatpush2.msra.mxu0 0.0
        %739 = vmatprep.subr.mxu0 0.0
        %740 = vmatpush2.msra.mxu0 0.0
        %741 = vmatprep.subr.mxu0 0.0
        %742 = vmatpush2.msra.mxu0 0.0
        %743 = vmatprep.subr.mxu0 0.0
        %744 = vmatpush2.msra.mxu0 0.0
        %745 = vmatprep.mubr.f32.mxu0 0.0
        %746 = vmatmul.mubr.f32.gmra.mxu0 %v679
        %v747 = vpop.f32.mrf.mxu0
        %v748 = vadd.f32 0.0, %v747
        %v749 = vpop.f32.mrf.mxu0
        %750 = vdwg.mxu0
        %752 = vrot.lane.b32.xlu0 %v748, 120
        %v753 = vpop.permute.xlu0 %752
        %v755 = vadd.f32 %v748, %v753
        %v757 = vsel %vm287, %v755, 0
        %759 = vmatprep.subr.mxu0 0.0
        %760 = vmatpush1.msra.mxu0 0.0
        %761 = vmatprep.subr.mxu0 0.0
        %762 = vmatpush1.msra.mxu0 0.0
        %763 = vmatprep.subr.mxu0 0.0
        %764 = vmatpush1.msra.mxu0 0.0
        %765 = vmatprep.subr.mxu0 0.0
        %766 = vmatpush1.msra.mxu0 0.0
        %767 = vmatprep.subr.mxu0 0.0
        %768 = vmatpush1.msra.mxu0 0.0
        %769 = vmatprep.subr.mxu0 0.0
        %770 = vmatpush1.msra.mxu0 0.0
        %771 = vmatprep.subr.mxu0 0.0
        %772 = vmatpush1.msra.mxu0 0.0
        %773 = vmatprep.subr.mxu0 0.0
        %774 = vmatpush1.msra.mxu0 0.0
        %775 = vmatprep.subr.mxu0 0.0
        %776 = vmatpush1.msra.mxu0 0.0
        %777 = vmatprep.subr.mxu0 0.0
        %778 = vmatpush1.msra.mxu0 0.0
        %779 = vmatprep.subr.mxu0 0.0
        %780 = vmatpush1.msra.mxu0 0.0
        %781 = vmatprep.subr.mxu0 0.0
        %782 = vmatpush1.msra.mxu0 0.0
        %783 = vmatprep.subr.mxu0 0.0
        %784 = vmatpush1.msra.mxu0 0.0
        %785 = vmatprep.subr.mxu0 0.0
        %786 = vmatpush1.msra.mxu0 0.0
        %787 = vmatprep.subr.mxu0 0.0
        %788 = vmatpush1.msra.mxu0 0.0
        %789 = vmatprep.subr.mxu0 0.0
        %790 = vmatpush1.msra.mxu0 %v748
        %791 = vmatprep.subr.mxu0 0.0
        %792 = vmatpush2.msra.mxu0 0.0
        %793 = vmatprep.subr.mxu0 0.0
        %794 = vmatpush2.msra.mxu0 0.0
        %795 = vmatprep.subr.mxu0 0.0
        %796 = vmatpush2.msra.mxu0 0.0
        %797 = vmatprep.subr.mxu0 0.0
        %798 = vmatpush2.msra.mxu0 0.0
        %799 = vmatprep.subr.mxu0 0.0
        %800 = vmatpush2.msra.mxu0 0.0
        %801 = vmatprep.subr.mxu0 0.0
        %802 = vmatpush2.msra.mxu0 0.0
        %803 = vmatprep.subr.mxu0 0.0
        %804 = vmatpush2.msra.mxu0 0.0
        %805 = vmatprep.subr.mxu0 0.0
        %806 = vmatpush2.msra.mxu0 0.0
        %807 = vmatprep.subr.mxu0 0.0
        %808 = vmatpush2.msra.mxu0 0.0
        %809 = vmatprep.subr.mxu0 0.0
        %810 = vmatpush2.msra.mxu0 0.0
        %811 = vmatprep.subr.mxu0 0.0
        %812 = vmatpush2.msra.mxu0 0.0
        %813 = vmatprep.subr.mxu0 0.0
        %814 = vmatpush2.msra.mxu0 0.0
        %815 = vmatprep.subr.mxu0 0.0
        %816 = vmatpush2.msra.mxu0 0.0
        %817 = vmatprep.subr.mxu0 0.0
        %818 = vmatpush2.msra.mxu0 0.0
        %819 = vmatprep.subr.mxu0 0.0
        %820 = vmatpush2.msra.mxu0 0.0
        %821 = vmatprep.subr.mxu0 0.0
        %822 = vmatpush2.msra.mxu0 0.0
        %823 = vmatprep.mubr.f32.mxu0 0.0
        %824 = vmatmul.mubr.f32.gmra.mxu0 %v757
        %v825 = vpop.f32.mrf.mxu0
        %v826 = vadd.f32 0.0, %v825
        %v827 = vpop.f32.mrf.mxu0
        %828 = vdwg.mxu0
        %s829 = scalar_lea.vmem %s168, 32 [#allocation2]
        %v830 = vld [vmem:[%s829] sm:$0xff]
        %s831 = scalar_lea.vmem %s177, 64 [#allocation5]
        %v832 = vld [vmem:[%s831] sm:$0xff]
        %v833 = vld [vmem:[%s831 + $0x8] sm:$0xff]
        %v835 = vsel %vm208, %v830, 0
        %837 = vmatprep.subr.mxu0 0.0
        %838 = vmatpush1.msra.mxu0 0.0
        %839 = vmatprep.subr.mxu0 0.0
        %840 = vmatpush1.msra.mxu0 0.0
        %841 = vmatprep.subr.mxu0 0.0
        %842 = vmatpush1.msra.mxu0 0.0
        %843 = vmatprep.subr.mxu0 0.0
        %844 = vmatpush1.msra.mxu0 0.0
        %845 = vmatprep.subr.mxu0 0.0
        %846 = vmatpush1.msra.mxu0 0.0
        %847 = vmatprep.subr.mxu0 0.0
        %848 = vmatpush1.msra.mxu0 0.0
        %849 = vmatprep.subr.mxu0 0.0
        %850 = vmatpush1.msra.mxu0 0.0
        %851 = vmatprep.subr.mxu0 0.0
        %852 = vmatpush1.msra.mxu0 0.0
        %853 = vmatprep.subr.mxu0 0.0
        %854 = vmatpush1.msra.mxu0 0.0
        %855 = vmatprep.subr.mxu0 0.0
        %856 = vmatpush1.msra.mxu0 0.0
        %857 = vmatprep.subr.mxu0 0.0
        %858 = vmatpush1.msra.mxu0 0.0
        %859 = vmatprep.subr.mxu0 0.0
        %860 = vmatpush1.msra.mxu0 0.0
        %861 = vmatprep.subr.mxu0 0.0
        %862 = vmatpush1.msra.mxu0 0.0
        %863 = vmatprep.subr.mxu0 0.0
        %864 = vmatpush1.msra.mxu0 0.0
        %865 = vmatprep.subr.mxu0 0.0
        %866 = vmatpush1.msra.mxu0 %v833
        %867 = vmatprep.subr.mxu0 0.0
        %868 = vmatpush1.msra.mxu0 %v832
        %869 = vmatprep.subr.mxu0 0.0
        %870 = vmatpush2.msra.mxu0 0.0
        %871 = vmatprep.subr.mxu0 0.0
        %872 = vmatpush2.msra.mxu0 0.0
        %873 = vmatprep.subr.mxu0 0.0
        %874 = vmatpush2.msra.mxu0 0.0
        %875 = vmatprep.subr.mxu0 0.0
        %876 = vmatpush2.msra.mxu0 0.0
        %877 = vmatprep.subr.mxu0 0.0
        %878 = vmatpush2.msra.mxu0 0.0
        %879 = vmatprep.subr.mxu0 0.0
        %880 = vmatpush2.msra.mxu0 0.0
        %881 = vmatprep.subr.mxu0 0.0
        %882 = vmatpush2.msra.mxu0 0.0
        %883 = vmatprep.subr.mxu0 0.0
        %884 = vmatpush2.msra.mxu0 0.0
        %885 = vmatprep.subr.mxu0 0.0
        %886 = vmatpush2.msra.mxu0 0.0
        %887 = vmatprep.subr.mxu0 0.0
        %888 = vmatpush2.msra.mxu0 0.0
        %889 = vmatprep.subr.mxu0 0.0
        %890 = vmatpush2.msra.mxu0 0.0
        %891 = vmatprep.subr.mxu0 0.0
        %892 = vmatpush2.msra.mxu0 0.0
        %893 = vmatprep.subr.mxu0 0.0
        %894 = vmatpush2.msra.mxu0 0.0
        %895 = vmatprep.subr.mxu0 0.0
        %896 = vmatpush2.msra.mxu0 0.0
        %897 = vmatprep.subr.mxu0 0.0
        %898 = vmatpush2.msra.mxu0 0.0
        %899 = vmatprep.subr.mxu0 0.0
        %900 = vmatpush2.msra.mxu0 0.0
        %901 = vmatprep.mubr.f32.mxu0 0.0
        %902 = vmatmul.mubr.f32.gmra.mxu0 %v835
        %v903 = vpop.f32.mrf.mxu0
        %v904 = vadd.f32 0.0, %v903
        %v905 = vpop.f32.mrf.mxu0
        %906 = vdwg.mxu0
        %908 = vrot.lane.b32.xlu0 %v904, 120
        %v909 = vpop.permute.xlu0 %908
        %v911 = vadd.f32 %v904, %v909
        %v913 = vsel %vm287, %v911, 0
        %915 = vmatprep.subr.mxu0 0.0
        %916 = vmatpush1.msra.mxu0 0.0
        %917 = vmatprep.subr.mxu0 0.0
        %918 = vmatpush1.msra.mxu0 0.0
        %919 = vmatprep.subr.mxu0 0.0
        %920 = vmatpush1.msra.mxu0 0.0
        %921 = vmatprep.subr.mxu0 0.0
        %922 = vmatpush1.msra.mxu0 0.0
        %923 = vmatprep.subr.mxu0 0.0
        %924 = vmatpush1.msra.mxu0 0.0
        %925 = vmatprep.subr.mxu0 0.0
        %926 = vmatpush1.msra.mxu0 0.0
        %927 = vmatprep.subr.mxu0 0.0
        %928 = vmatpush1.msra.mxu0 0.0
        %929 = vmatprep.subr.mxu0 0.0
        %930 = vmatpush1.msra.mxu0 0.0
        %931 = vmatprep.subr.mxu0 0.0
        %932 = vmatpush1.msra.mxu0 0.0
        %933 = vmatprep.subr.mxu0 0.0
        %934 = vmatpush1.msra.mxu0 0.0
        %935 = vmatprep.subr.mxu0 0.0
        %936 = vmatpush1.msra.mxu0 0.0
        %937 = vmatprep.subr.mxu0 0.0
        %938 = vmatpush1.msra.mxu0 0.0
        %939 = vmatprep.subr.mxu0 0.0
        %940 = vmatpush1.msra.mxu0 0.0
        %941 = vmatprep.subr.mxu0 0.0
        %942 = vmatpush1.msra.mxu0 0.0
        %943 = vmatprep.subr.mxu0 0.0
        %944 = vmatpush1.msra.mxu0 0.0
        %945 = vmatprep.subr.mxu0 0.0
        %946 = vmatpush1.msra.mxu0 %v904
        %947 = vmatprep.subr.mxu0 0.0
        %948 = vmatpush2.msra.mxu0 0.0
        %949 = vmatprep.subr.mxu0 0.0
        %950 = vmatpush2.msra.mxu0 0.0
        %951 = vmatprep.subr.mxu0 0.0
        %952 = vmatpush2.msra.mxu0 0.0
        %953 = vmatprep.subr.mxu0 0.0
        %954 = vmatpush2.msra.mxu0 0.0
        %955 = vmatprep.subr.mxu0 0.0
        %956 = vmatpush2.msra.mxu0 0.0
        %957 = vmatprep.subr.mxu0 0.0
        %958 = vmatpush2.msra.mxu0 0.0
        %959 = vmatprep.subr.mxu0 0.0
        %960 = vmatpush2.msra.mxu0 0.0
        %961 = vmatprep.subr.mxu0 0.0
        %962 = vmatpush2.msra.mxu0 0.0
        %963 = vmatprep.subr.mxu0 0.0
        %964 = vmatpush2.msra.mxu0 0.0
        %965 = vmatprep.subr.mxu0 0.0
        %966 = vmatpush2.msra.mxu0 0.0
        %967 = vmatprep.subr.mxu0 0.0
        %968 = vmatpush2.msra.mxu0 0.0
        %969 = vmatprep.subr.mxu0 0.0
        %970 = vmatpush2.msra.mxu0 0.0
        %971 = vmatprep.subr.mxu0 0.0
        %972 = vmatpush2.msra.mxu0 0.0
        %973 = vmatprep.subr.mxu0 0.0
        %974 = vmatpush2.msra.mxu0 0.0
        %975 = vmatprep.subr.mxu0 0.0
        %976 = vmatpush2.msra.mxu0 0.0
        %977 = vmatprep.subr.mxu0 0.0
        %978 = vmatpush2.msra.mxu0 0.0
        %979 = vmatprep.mubr.f32.mxu0 0.0
        %980 = vmatmul.mubr.f32.gmra.mxu0 %v913
        %v981 = vpop.f32.mrf.mxu0
        %v982 = vadd.f32 0.0, %v981
        %v983 = vpop.f32.mrf.mxu0
        %984 = vdwg.mxu0
        %s985 = scalar_lea.vmem %s168, 40 [#allocation2]
        %v986 = vld [vmem:[%s985] sm:$0xff]
        %s987 = scalar_lea.vmem %s177, 80 [#allocation5]
        %v988 = vld [vmem:[%s987] sm:$0xff]
        %v989 = vld [vmem:[%s987 + $0x8] sm:$0xff]
        %v991 = vsel %vm208, %v986, 0
        %993 = vmatprep.subr.mxu0 0.0
        %994 = vmatpush1.msra.mxu0 0.0
        %995 = vmatprep.subr.mxu0 0.0
        %996 = vmatpush1.msra.mxu0 0.0
        %997 = vmatprep.subr.mxu0 0.0
        %998 = vmatpush1.msra.mxu0 0.0
        %999 = vmatprep.subr.mxu0 0.0
        %1000 = vmatpush1.msra.mxu0 0.0
        %1001 = vmatprep.subr.mxu0 0.0
        %1002 = vmatpush1.msra.mxu0 0.0
        %1003 = vmatprep.subr.mxu0 0.0
        %1004 = vmatpush1.msra.mxu0 0.0
        %1005 = vmatprep.subr.mxu0 0.0
        %1006 = vmatpush1.msra.mxu0 0.0
        %1007 = vmatprep.subr.mxu0 0.0
        %1008 = vmatpush1.msra.mxu0 0.0
        %1009 = vmatprep.subr.mxu0 0.0
        %1010 = vmatpush1.msra.mxu0 0.0
        %1011 = vmatprep.subr.mxu0 0.0
        %1012 = vmatpush1.msra.mxu0 0.0
        %1013 = vmatprep.subr.mxu0 0.0
        %1014 = vmatpush1.msra.mxu0 0.0
        %1015 = vmatprep.subr.mxu0 0.0
        %1016 = vmatpush1.msra.mxu0 0.0
        %1017 = vmatprep.subr.mxu0 0.0
        %1018 = vmatpush1.msra.mxu0 0.0
        %1019 = vmatprep.subr.mxu0 0.0
        %1020 = vmatpush1.msra.mxu0 0.0
        %1021 = vmatprep.subr.mxu0 0.0
        %1022 = vmatpush1.msra.mxu0 %v989
        %1023 = vmatprep.subr.mxu0 0.0
        %1024 = vmatpush1.msra.mxu0 %v988
        %1025 = vmatprep.subr.mxu0 0.0
        %1026 = vmatpush2.msra.mxu0 0.0
        %1027 = vmatprep.subr.mxu0 0.0
        %1028 = vmatpush2.msra.mxu0 0.0
        %1029 = vmatprep.subr.mxu0 0.0
        %1030 = vmatpush2.msra.mxu0 0.0
        %1031 = vmatprep.subr.mxu0 0.0
        %1032 = vmatpush2.msra.mxu0 0.0
        %1033 = vmatprep.subr.mxu0 0.0
        %1034 = vmatpush2.msra.mxu0 0.0
        %1035 = vmatprep.subr.mxu0 0.0
        %1036 = vmatpush2.msra.mxu0 0.0
        %1037 = vmatprep.subr.mxu0 0.0
        %1038 = vmatpush2.msra.mxu0 0.0
        %1039 = vmatprep.subr.mxu0 0.0
        %1040 = vmatpush2.msra.mxu0 0.0
        %1041 = vmatprep.subr.mxu0 0.0
        %1042 = vmatpush2.msra.mxu0 0.0
        %1043 = vmatprep.subr.mxu0 0.0
        %1044 = vmatpush2.msra.mxu0 0.0
        %1045 = vmatprep.subr.mxu0 0.0
        %1046 = vmatpush2.msra.mxu0 0.0
        %1047 = vmatprep.subr.mxu0 0.0
        %1048 = vmatpush2.msra.mxu0 0.0
        %1049 = vmatprep.subr.mxu0 0.0
        %1050 = vmatpush2.msra.mxu0 0.0
        %1051 = vmatprep.subr.mxu0 0.0
        %1052 = vmatpush2.msra.mxu0 0.0
        %1053 = vmatprep.subr.mxu0 0.0
        %1054 = vmatpush2.msra.mxu0 0.0
        %1055 = vmatprep.subr.mxu0 0.0
        %1056 = vmatpush2.msra.mxu0 0.0
        %1057 = vmatprep.mubr.f32.mxu0 0.0
        %1058 = vmatmul.mubr.f32.gmra.mxu0 %v991
        %v1059 = vpop.f32.mrf.mxu0
        %v1060 = vadd.f32 0.0, %v1059
        %v1061 = vpop.f32.mrf.mxu0
        %1062 = vdwg.mxu0
        %1064 = vrot.lane.b32.xlu0 %v1060, 120
        %v1065 = vpop.permute.xlu0 %1064
        %v1067 = vadd.f32 %v1060, %v1065
        %v1069 = vsel %vm287, %v1067, 0
        %1071 = vmatprep.subr.mxu0 0.0
        %1072 = vmatpush1.msra.mxu0 0.0
        %1073 = vmatprep.subr.mxu0 0.0
        %1074 = vmatpush1.msra.mxu0 0.0
        %1075 = vmatprep.subr.mxu0 0.0
        %1076 = vmatpush1.msra.mxu0 0.0
        %1077 = vmatprep.subr.mxu0 0.0
        %1078 = vmatpush1.msra.mxu0 0.0
        %1079 = vmatprep.subr.mxu0 0.0
        %1080 = vmatpush1.msra.mxu0 0.0
        %1081 = vmatprep.subr.mxu0 0.0
        %1082 = vmatpush1.msra.mxu0 0.0
        %1083 = vmatprep.subr.mxu0 0.0
        %1084 = vmatpush1.msra.mxu0 0.0
        %1085 = vmatprep.subr.mxu0 0.0
        %1086 = vmatpush1.msra.mxu0 0.0
        %1087 = vmatprep.subr.mxu0 0.0
        %1088 = vmatpush1.msra.mxu0 0.0
        %1089 = vmatprep.subr.mxu0 0.0
        %1090 = vmatpush1.msra.mxu0 0.0
        %1091 = vmatprep.subr.mxu0 0.0
        %1092 = vmatpush1.msra.mxu0 0.0
        %1093 = vmatprep.subr.mxu0 0.0
        %1094 = vmatpush1.msra.mxu0 0.0
        %1095 = vmatprep.subr.mxu0 0.0
        %1096 = vmatpush1.msra.mxu0 0.0
        %1097 = vmatprep.subr.mxu0 0.0
        %1098 = vmatpush1.msra.mxu0 0.0
        %1099 = vmatprep.subr.mxu0 0.0
        %1100 = vmatpush1.msra.mxu0 0.0
        %1101 = vmatprep.subr.mxu0 0.0
        %1102 = vmatpush1.msra.mxu0 %v1060
        %1103 = vmatprep.subr.mxu0 0.0
        %1104 = vmatpush2.msra.mxu0 0.0
        %1105 = vmatprep.subr.mxu0 0.0
        %1106 = vmatpush2.msra.mxu0 0.0
        %1107 = vmatprep.subr.mxu0 0.0
        %1108 = vmatpush2.msra.mxu0 0.0
        %1109 = vmatprep.subr.mxu0 0.0
        %1110 = vmatpush2.msra.mxu0 0.0
        %1111 = vmatprep.subr.mxu0 0.0
        %1112 = vmatpush2.msra.mxu0 0.0
        %1113 = vmatprep.subr.mxu0 0.0
        %1114 = vmatpush2.msra.mxu0 0.0
        %1115 = vmatprep.subr.mxu0 0.0
        %1116 = vmatpush2.msra.mxu0 0.0
        %1117 = vmatprep.subr.mxu0 0.0
        %1118 = vmatpush2.msra.mxu0 0.0
        %1119 = vmatprep.subr.mxu0 0.0
        %1120 = vmatpush2.msra.mxu0 0.0
        %1121 = vmatprep.subr.mxu0 0.0
        %1122 = vmatpush2.msra.mxu0 0.0
        %1123 = vmatprep.subr.mxu0 0.0
        %1124 = vmatpush2.msra.mxu0 0.0
        %1125 = vmatprep.subr.mxu0 0.0
        %1126 = vmatpush2.msra.mxu0 0.0
        %1127 = vmatprep.subr.mxu0 0.0
        %1128 = vmatpush2.msra.mxu0 0.0
        %1129 = vmatprep.subr.mxu0 0.0
        %1130 = vmatpush2.msra.mxu0 0.0
        %1131 = vmatprep.subr.mxu0 0.0
        %1132 = vmatpush2.msra.mxu0 0.0
        %1133 = vmatprep.subr.mxu0 0.0
        %1134 = vmatpush2.msra.mxu0 0.0
        %1135 = vmatprep.mubr.f32.mxu0 0.0
        %1136 = vmatmul.mubr.f32.gmra.mxu0 %v1069
        %v1137 = vpop.f32.mrf.mxu0
        %v1138 = vadd.f32 0.0, %v1137
        %v1139 = vpop.f32.mrf.mxu0
        %1140 = vdwg.mxu0
        %s1141 = scalar_lea.vmem %s168, 48 [#allocation2]
        %v1142 = vld [vmem:[%s1141] sm:$0xff]
        %s1143 = scalar_lea.vmem %s177, 96 [#allocation5]
        %v1144 = vld [vmem:[%s1143] sm:$0xff]
        %v1145 = vld [vmem:[%s1143 + $0x8] sm:$0xff]
        %v1147 = vsel %vm208, %v1142, 0
        %1149 = vmatprep.subr.mxu0 0.0
        %1150 = vmatpush1.msra.mxu0 0.0
        %1151 = vmatprep.subr.mxu0 0.0
        %1152 = vmatpush1.msra.mxu0 0.0
        %1153 = vmatprep.subr.mxu0 0.0
        %1154 = vmatpush1.msra.mxu0 0.0
        %1155 = vmatprep.subr.mxu0 0.0
        %1156 = vmatpush1.msra.mxu0 0.0
        %1157 = vmatprep.subr.mxu0 0.0
        %1158 = vmatpush1.msra.mxu0 0.0
        %1159 = vmatprep.subr.mxu0 0.0
        %1160 = vmatpush1.msra.mxu0 0.0
        %1161 = vmatprep.subr.mxu0 0.0
        %1162 = vmatpush1.msra.mxu0 0.0
        %1163 = vmatprep.subr.mxu0 0.0
        %1164 = vmatpush1.msra.mxu0 0.0
        %1165 = vmatprep.subr.mxu0 0.0
        %1166 = vmatpush1.msra.mxu0 0.0
        %1167 = vmatprep.subr.mxu0 0.0
        %1168 = vmatpush1.msra.mxu0 0.0
        %1169 = vmatprep.subr.mxu0 0.0
        %1170 = vmatpush1.msra.mxu0 0.0
        %1171 = vmatprep.subr.mxu0 0.0
        %1172 = vmatpush1.msra.mxu0 0.0
        %1173 = vmatprep.subr.mxu0 0.0
        %1174 = vmatpush1.msra.mxu0 0.0
        %1175 = vmatprep.subr.mxu0 0.0
        %1176 = vmatpush1.msra.mxu0 0.0
        %1177 = vmatprep.subr.mxu0 0.0
        %1178 = vmatpush1.msra.mxu0 %v1145
        %1179 = vmatprep.subr.mxu0 0.0
        %1180 = vmatpush1.msra.mxu0 %v1144
        %1181 = vmatprep.subr.mxu0 0.0
        %1182 = vmatpush2.msra.mxu0 0.0
        %1183 = vmatprep.subr.mxu0 0.0
        %1184 = vmatpush2.msra.mxu0 0.0
        %1185 = vmatprep.subr.mxu0 0.0
        %1186 = vmatpush2.msra.mxu0 0.0
        %1187 = vmatprep.subr.mxu0 0.0
        %1188 = vmatpush2.msra.mxu0 0.0
        %1189 = vmatprep.subr.mxu0 0.0
        %1190 = vmatpush2.msra.mxu0 0.0
        %1191 = vmatprep.subr.mxu0 0.0
        %1192 = vmatpush2.msra.mxu0 0.0
        %1193 = vmatprep.subr.mxu0 0.0
        %1194 = vmatpush2.msra.mxu0 0.0
        %1195 = vmatprep.subr.mxu0 0.0
        %1196 = vmatpush2.msra.mxu0 0.0
        %1197 = vmatprep.subr.mxu0 0.0
        %1198 = vmatpush2.msra.mxu0 0.0
        %1199 = vmatprep.subr.mxu0 0.0
        %1200 = vmatpush2.msra.mxu0 0.0
        %1201 = vmatprep.subr.mxu0 0.0
        %1202 = vmatpush2.msra.mxu0 0.0
        %1203 = vmatprep.subr.mxu0 0.0
        %1204 = vmatpush2.msra.mxu0 0.0
        %1205 = vmatprep.subr.mxu0 0.0
        %1206 = vmatpush2.msra.mxu0 0.0
        %1207 = vmatprep.subr.mxu0 0.0
        %1208 = vmatpush2.msra.mxu0 0.0
        %1209 = vmatprep.subr.mxu0 0.0
        %1210 = vmatpush2.msra.mxu0 0.0
        %1211 = vmatprep.subr.mxu0 0.0
        %1212 = vmatpush2.msra.mxu0 0.0
        %1213 = vmatprep.mubr.f32.mxu0 0.0
        %1214 = vmatmul.mubr.f32.gmra.mxu0 %v1147
        %v1215 = vpop.f32.mrf.mxu0
        %v1216 = vadd.f32 0.0, %v1215
        %v1217 = vpop.f32.mrf.mxu0
        %1218 = vdwg.mxu0
        %1220 = vrot.lane.b32.xlu0 %v1216, 120
        %v1221 = vpop.permute.xlu0 %1220
        %v1223 = vadd.f32 %v1216, %v1221
        %v1225 = vsel %vm287, %v1223, 0
        %1227 = vmatprep.subr.mxu0 0.0
        %1228 = vmatpush1.msra.mxu0 0.0
        %1229 = vmatprep.subr.mxu0 0.0
        %1230 = vmatpush1.msra.mxu0 0.0
        %1231 = vmatprep.subr.mxu0 0.0
        %1232 = vmatpush1.msra.mxu0 0.0
        %1233 = vmatprep.subr.mxu0 0.0
        %1234 = vmatpush1.msra.mxu0 0.0
        %1235 = vmatprep.subr.mxu0 0.0
        %1236 = vmatpush1.msra.mxu0 0.0
        %1237 = vmatprep.subr.mxu0 0.0
        %1238 = vmatpush1.msra.mxu0 0.0
        %1239 = vmatprep.subr.mxu0 0.0
        %1240 = vmatpush1.msra.mxu0 0.0
        %1241 = vmatprep.subr.mxu0 0.0
        %1242 = vmatpush1.msra.mxu0 0.0
        %1243 = vmatprep.subr.mxu0 0.0
        %1244 = vmatpush1.msra.mxu0 0.0
        %1245 = vmatprep.subr.mxu0 0.0
        %1246 = vmatpush1.msra.mxu0 0.0
        %1247 = vmatprep.subr.mxu0 0.0
        %1248 = vmatpush1.msra.mxu0 0.0
        %1249 = vmatprep.subr.mxu0 0.0
        %1250 = vmatpush1.msra.mxu0 0.0
        %1251 = vmatprep.subr.mxu0 0.0
        %1252 = vmatpush1.msra.mxu0 0.0
        %1253 = vmatprep.subr.mxu0 0.0
        %1254 = vmatpush1.msra.mxu0 0.0
        %1255 = vmatprep.subr.mxu0 0.0
        %1256 = vmatpush1.msra.mxu0 0.0
        %1257 = vmatprep.subr.mxu0 0.0
        %1258 = vmatpush1.msra.mxu0 %v1216
        %1259 = vmatprep.subr.mxu0 0.0
        %1260 = vmatpush2.msra.mxu0 0.0
        %1261 = vmatprep.subr.mxu0 0.0
        %1262 = vmatpush2.msra.mxu0 0.0
        %1263 = vmatprep.subr.mxu0 0.0
        %1264 = vmatpush2.msra.mxu0 0.0
        %1265 = vmatprep.subr.mxu0 0.0
        %1266 = vmatpush2.msra.mxu0 0.0
        %1267 = vmatprep.subr.mxu0 0.0
        %1268 = vmatpush2.msra.mxu0 0.0
        %1269 = vmatprep.subr.mxu0 0.0
        %1270 = vmatpush2.msra.mxu0 0.0
        %1271 = vmatprep.subr.mxu0 0.0
        %1272 = vmatpush2.msra.mxu0 0.0
        %1273 = vmatprep.subr.mxu0 0.0
        %1274 = vmatpush2.msra.mxu0 0.0
        %1275 = vmatprep.subr.mxu0 0.0
        %1276 = vmatpush2.msra.mxu0 0.0
        %1277 = vmatprep.subr.mxu0 0.0
        %1278 = vmatpush2.msra.mxu0 0.0
        %1279 = vmatprep.subr.mxu0 0.0
        %1280 = vmatpush2.msra.mxu0 0.0
        %1281 = vmatprep.subr.mxu0 0.0
        %1282 = vmatpush2.msra.mxu0 0.0
        %1283 = vmatprep.subr.mxu0 0.0
        %1284 = vmatpush2.msra.mxu0 0.0
        %1285 = vmatprep.subr.mxu0 0.0
        %1286 = vmatpush2.msra.mxu0 0.0
        %1287 = vmatprep.subr.mxu0 0.0
        %1288 = vmatpush2.msra.mxu0 0.0
        %1289 = vmatprep.subr.mxu0 0.0
        %1290 = vmatpush2.msra.mxu0 0.0
        %1291 = vmatprep.mubr.f32.mxu0 0.0
        %1292 = vmatmul.mubr.f32.gmra.mxu0 %v1225
        %v1293 = vpop.f32.mrf.mxu0
        %v1294 = vadd.f32 0.0, %v1293
        %v1295 = vpop.f32.mrf.mxu0
        %1296 = vdwg.mxu0
        %s1297 = scalar_lea.vmem %s168, 56 [#allocation2]
        %v1298 = vld [vmem:[%s1297] sm:$0xff]
        %s1299 = scalar_lea.vmem %s177, 112 [#allocation5]
        %v1300 = vld [vmem:[%s1299] sm:$0xff]
        %v1301 = vld [vmem:[%s1299 + $0x8] sm:$0xff]
        %v1303 = vsel %vm208, %v1298, 0
        %1305 = vmatprep.subr.mxu0 0.0
        %1306 = vmatpush1.msra.mxu0 0.0
        %1307 = vmatprep.subr.mxu0 0.0
        %1308 = vmatpush1.msra.mxu0 0.0
        %1309 = vmatprep.subr.mxu0 0.0
        %1310 = vmatpush1.msra.mxu0 0.0
        %1311 = vmatprep.subr.mxu0 0.0
        %1312 = vmatpush1.msra.mxu0 0.0
        %1313 = vmatprep.subr.mxu0 0.0
        %1314 = vmatpush1.msra.mxu0 0.0
        %1315 = vmatprep.subr.mxu0 0.0
        %1316 = vmatpush1.msra.mxu0 0.0
        %1317 = vmatprep.subr.mxu0 0.0
        %1318 = vmatpush1.msra.mxu0 0.0
        %1319 = vmatprep.subr.mxu0 0.0
        %1320 = vmatpush1.msra.mxu0 0.0
        %1321 = vmatprep.subr.mxu0 0.0
        %1322 = vmatpush1.msra.mxu0 0.0
        %1323 = vmatprep.subr.mxu0 0.0
        %1324 = vmatpush1.msra.mxu0 0.0
        %1325 = vmatprep.subr.mxu0 0.0
        %1326 = vmatpush1.msra.mxu0 0.0
        %1327 = vmatprep.subr.mxu0 0.0
        %1328 = vmatpush1.msra.mxu0 0.0
        %1329 = vmatprep.subr.mxu0 0.0
        %1330 = vmatpush1.msra.mxu0 0.0
        %1331 = vmatprep.subr.mxu0 0.0
        %1332 = vmatpush1.msra.mxu0 0.0
        %1333 = vmatprep.subr.mxu0 0.0
        %1334 = vmatpush1.msra.mxu0 %v1301
        %1335 = vmatprep.subr.mxu0 0.0
        %1336 = vmatpush1.msra.mxu0 %v1300
        %1337 = vmatprep.subr.mxu0 0.0
        %1338 = vmatpush2.msra.mxu0 0.0
        %1339 = vmatprep.subr.mxu0 0.0
        %1340 = vmatpush2.msra.mxu0 0.0
        %1341 = vmatprep.subr.mxu0 0.0
        %1342 = vmatpush2.msra.mxu0 0.0
        %1343 = vmatprep.subr.mxu0 0.0
        %1344 = vmatpush2.msra.mxu0 0.0
        %1345 = vmatprep.subr.mxu0 0.0
        %1346 = vmatpush2.msra.mxu0 0.0
        %1347 = vmatprep.subr.mxu0 0.0
        %1348 = vmatpush2.msra.mxu0 0.0
        %1349 = vmatprep.subr.mxu0 0.0
        %1350 = vmatpush2.msra.mxu0 0.0
        %1351 = vmatprep.subr.mxu0 0.0
        %1352 = vmatpush2.msra.mxu0 0.0
        %1353 = vmatprep.subr.mxu0 0.0
        %1354 = vmatpush2.msra.mxu0 0.0
        %1355 = vmatprep.subr.mxu0 0.0
        %1356 = vmatpush2.msra.mxu0 0.0
        %1357 = vmatprep.subr.mxu0 0.0
        %1358 = vmatpush2.msra.mxu0 0.0
        %1359 = vmatprep.subr.mxu0 0.0
        %1360 = vmatpush2.msra.mxu0 0.0
        %1361 = vmatprep.subr.mxu0 0.0
        %1362 = vmatpush2.msra.mxu0 0.0
        %1363 = vmatprep.subr.mxu0 0.0
        %1364 = vmatpush2.msra.mxu0 0.0
        %1365 = vmatprep.subr.mxu0 0.0
        %1366 = vmatpush2.msra.mxu0 0.0
        %1367 = vmatprep.subr.mxu0 0.0
        %1368 = vmatpush2.msra.mxu0 0.0
        %1369 = vmatprep.mubr.f32.mxu0 0.0
        %1370 = vmatmul.mubr.f32.gmra.mxu0 %v1303
        %v1371 = vpop.f32.mrf.mxu0
        %v1372 = vadd.f32 0.0, %v1371
        %v1373 = vpop.f32.mrf.mxu0
        %1374 = vdwg.mxu0
        %1376 = vrot.lane.b32.xlu0 %v1372, 120
        %v1377 = vpop.permute.xlu0 %1376
        %v1379 = vadd.f32 %v1372, %v1377
        %v1381 = vsel %vm287, %v1379, 0
        %1383 = vmatprep.subr.mxu0 0.0
        %1384 = vmatpush1.msra.mxu0 0.0
        %1385 = vmatprep.subr.mxu0 0.0
        %1386 = vmatpush1.msra.mxu0 0.0
        %1387 = vmatprep.subr.mxu0 0.0
        %1388 = vmatpush1.msra.mxu0 0.0
        %1389 = vmatprep.subr.mxu0 0.0
        %1390 = vmatpush1.msra.mxu0 0.0
        %1391 = vmatprep.subr.mxu0 0.0
        %1392 = vmatpush1.msra.mxu0 0.0
        %1393 = vmatprep.subr.mxu0 0.0
        %1394 = vmatpush1.msra.mxu0 0.0
        %1395 = vmatprep.subr.mxu0 0.0
        %1396 = vmatpush1.msra.mxu0 0.0
        %1397 = vmatprep.subr.mxu0 0.0
        %1398 = vmatpush1.msra.mxu0 0.0
        %1399 = vmatprep.subr.mxu0 0.0
        %1400 = vmatpush1.msra.mxu0 0.0
        %1401 = vmatprep.subr.mxu0 0.0
        %1402 = vmatpush1.msra.mxu0 0.0
        %1403 = vmatprep.subr.mxu0 0.0
        %1404 = vmatpush1.msra.mxu0 0.0
        %1405 = vmatprep.subr.mxu0 0.0
        %1406 = vmatpush1.msra.mxu0 0.0
        %1407 = vmatprep.subr.mxu0 0.0
        %1408 = vmatpush1.msra.mxu0 0.0
        %1409 = vmatprep.subr.mxu0 0.0
        %1410 = vmatpush1.msra.mxu0 0.0
        %1411 = vmatprep.subr.mxu0 0.0
        %1412 = vmatpush1.msra.mxu0 0.0
        %1413 = vmatprep.subr.mxu0 0.0
        %1414 = vmatpush1.msra.mxu0 %v1372
        %1415 = vmatprep.subr.mxu0 0.0
        %1416 = vmatpush2.msra.mxu0 0.0
        %1417 = vmatprep.subr.mxu0 0.0
        %1418 = vmatpush2.msra.mxu0 0.0
        %1419 = vmatprep.subr.mxu0 0.0
        %1420 = vmatpush2.msra.mxu0 0.0
        %1421 = vmatprep.subr.mxu0 0.0
        %1422 = vmatpush2.msra.mxu0 0.0
        %1423 = vmatprep.subr.mxu0 0.0
        %1424 = vmatpush2.msra.mxu0 0.0
        %1425 = vmatprep.subr.mxu0 0.0
        %1426 = vmatpush2.msra.mxu0 0.0
        %1427 = vmatprep.subr.mxu0 0.0
        %1428 = vmatpush2.msra.mxu0 0.0
        %1429 = vmatprep.subr.mxu0 0.0
        %1430 = vmatpush2.msra.mxu0 0.0
        %1431 = vmatprep.subr.mxu0 0.0
        %1432 = vmatpush2.msra.mxu0 0.0
        %1433 = vmatprep.subr.mxu0 0.0
        %1434 = vmatpush2.msra.mxu0 0.0
        %1435 = vmatprep.subr.mxu0 0.0
        %1436 = vmatpush2.msra.mxu0 0.0
        %1437 = vmatprep.subr.mxu0 0.0
        %1438 = vmatpush2.msra.mxu0 0.0
        %1439 = vmatprep.subr.mxu0 0.0
        %1440 = vmatpush2.msra.mxu0 0.0
        %1441 = vmatprep.subr.mxu0 0.0
        %1442 = vmatpush2.msra.mxu0 0.0
        %1443 = vmatprep.subr.mxu0 0.0
        %1444 = vmatpush2.msra.mxu0 0.0
        %1445 = vmatprep.subr.mxu0 0.0
        %1446 = vmatpush2.msra.mxu0 0.0
        %1447 = vmatprep.mubr.f32.mxu0 0.0
        %1448 = vmatmul.mubr.f32.gmra.mxu0 %v1381
        %v1449 = vpop.f32.mrf.mxu0
        %v1450 = vadd.f32 0.0, %v1449
        %v1451 = vpop.f32.mrf.mxu0
        %1452 = vdwg.mxu0
        %1454 = vrot.lane.b32.xlu0 %v514, 16
        %v1455 = vpop.permute.xlu0 %1454
        %1458 = vrot.lane.b32.xlu0 %v670, 32
        %v1459 = vpop.permute.xlu0 %1458
        %1462 = vrot.lane.b32.xlu0 %v826, 48
        %v1463 = vpop.permute.xlu0 %1462
        %1466 = vrot.lane.b32.xlu0 %v982, 64
        %v1467 = vpop.permute.xlu0 %1466
        %1470 = vrot.lane.b32.xlu0 %v1138, 80
        %v1471 = vpop.permute.xlu0 %1470
        %1474 = vrot.lane.b32.xlu0 %v1294, 96
        %v1475 = vpop.permute.xlu0 %1474
        %1478 = vrot.lane.b32.xlu0 %v1450, 112
        %v1479 = vpop.permute.xlu0 %1478
        %v1481 = vsel %vm208, %v358, %v1455
        %vm1482 = vcmask 261120
        %v1483 = vsel %vm1482, %v1481, %v1459
        %vm1484 = vcmask 392192
        %v1485 = vsel %vm1484, %v1483, %v1463
        %vm1486 = vcmask 523264
        %v1487 = vsel %vm1486, %v1485, %v1467
        %vm1488 = vcmask 654336
        %v1489 = vsel %vm1488, %v1487, %v1471
        %vm1490 = vcmask 785408
        %v1491 = vsel %vm1490, %v1489, %v1475
        %vm1492 = vcmask 916480
        %v1493 = vsel %vm1492, %v1491, %v1479
        %1494 = vst [vmem:[%s202] sm:$0xff] %v1493
        %1495 = vst [vmem:[%s202 + $0x8] sm:$0xff] %v1493
        %s1496 = sand.u32 %s82, 1
        %s1497 = scalar_lea.sflag [#allocation4], %s1496
        %s1498 = sand.u32 %s82, 1
        %s1499 = smul.addr %s1498, 16
        %s1500 = scalar_lea.vmem [#allocation7], %s1499
        // Predicated region
        $region37: #{tpu_custom_call.1} parent=27 // pred_check
          %p1501 = pneg %p92
        $region38: #{tpu_custom_call.1} parent=27 // pred_check_branch
          %1503 = sbr.rel (%p1501) target = $region40
        $region39: #{tpu_custom_call.1} parent=27 // pred_region
          %s1505 = ssub.s32 256, 256
          %1506 = vsyncadd %s1497, %s1505
          %s1507 = smul.addr %s22, 128
          %s1508 = scalar_lea.hbm %s2, %s1507
          %s1509 = sshll.u32 %s1500, 4
          %s1510 = int_to_ptr.vmem [resolvable:$true] %s1509
          %1515 = dma.vmem_to_hbm [thread:$0]  %s1510, 256, %s1508, %s1497, 128, 256, 8
        $region40: #{tpu_custom_call.1} parent=27 // pred_fallthru
          _
      $region28: #{tpu_custom_call.1} parent=5 // pred_fallthru
        _
      %p1516 = scmp.le.s32.totalorder 2, %s17
      // Predicated region
      $region41: #{tpu_custom_call.1} parent=5 // pred_check
        %p1517 = pneg %p1516
      $region42: #{tpu_custom_call.1} parent=5 // pred_check_branch
        %1519 = sbr.rel (%p1517) target = $region44
      $region43: #{tpu_custom_call.1} parent=5 // pred_region
        %s1520 = ssub.s32 %s17, 2
        // Predicated region
        $region45: #{tpu_custom_call.1} parent=43 // pred_check
          %p1521 = pneg %p98
        $region46: #{tpu_custom_call.1} parent=43 // pred_check_branch
          %1523 = sbr.rel (%p1521) target = $region48
        $region47: #{tpu_custom_call.1} parent=43 // pred_region
          %s1524 = sand.u32 %s83, 1
          %s1525 = scalar_lea.sflag [#allocation4], %s1524
          %s1526 = sand.u32 %s83, 1
          %s1527 = smul.addr %s1526, 16
          %s1528 = scalar_lea.vmem [#allocation7], %s1527
          %1529 = dma.done %s1525, 256
        $region48: #{tpu_custom_call.1} parent=43 // pred_fallthru
          _
      $region44: #{tpu_custom_call.1} parent=5 // pred_fallthru
        _
    $region6: #{tpu_custom_call.1} parent=1 // loop_footer
      %s21 = sadd.s32 1, %s17
    $region7: #{tpu_custom_call.1} parent=1 // loop_footer_branch
      %16 = sbr.rel target = $region3
    $region8: #{tpu_custom_call.1} parent=1 // loop_exit
      _
    %1530 = vsyncpa [#allocation3], 1
    %s1531 = scalar_lea.sflag [#allocation3], 1
    %1532 = vsyncpa %s1531, 1
    %1533 = vsyncpa [#allocation6], 1
    %s1534 = scalar_lea.sflag [#allocation6], 1
    %1535 = vsyncpa %s1534, 1
    %1536 = vsyncpa [#allocation4], 1
    %s1537 = scalar_lea.sflag [#allocation4], 1
    %1538 = vsyncpa %s1537, 1

</llo_original>
